<compile_context>
chip_gen: v5e
topology: v5e:2x2
jax: 0.10.0
libtpu: 0.0.40
codegen_flags: <defaults>
</compile_context>

<pallas_src>
import math
import jax
import jax.numpy as jnp
from jax import lax
from jax.experimental import pallas as pl
from jax.experimental.pallas import tpu as pltpu

# ----- small GPT-2 style config ------------------------------------------------
VOCAB = 128
N_LAYER = 2
N_HEAD = 4
D_MODEL = 32
D_HEAD = D_MODEL // N_HEAD
D_FF = 4 * D_MODEL
SEQ = 8
BATCH = 2
MAX_POS = 16
EPS = 1e-5

SQRT_2_OVER_PI = math.sqrt(2.0 / math.pi)
SCALE = 1.0 / math.sqrt(D_HEAD)

# Packed small-parameter layout: one row (128 lanes) per vector parameter.
SMALL_W = 128
assert D_FF <= SMALL_W and 3 * D_MODEL <= SMALL_W
ROWS_PER_LAYER = 8
(ROW_LN1G, ROW_LN1B, ROW_BQKV, ROW_BO,
 ROW_LN2G, ROW_LN2B, ROW_BFC, ROW_BPO) = range(ROWS_PER_LAYER)
N_SMALL_ROWS = N_LAYER * ROWS_PER_LAYER + 2          # + final LN gamma/beta


# ----- in-kernel helpers -------------------------------------------------------
def _layernorm(x, g, b):
    mu = jnp.mean(x, axis=-1, keepdims=True)
    var = jnp.mean((x - mu) ** 2, axis=-1, keepdims=True)
    return (x - mu) * lax.rsqrt(var + EPS) * g + b


def _gelu_new(x):
    # GPT-2 "gelu_new" (tanh approximation); tanh rides the EUP slot.
    return 0.5 * x * (1.0 + jnp.tanh(SQRT_2_OVER_PI * (x + 0.044715 * x ** 3)))


# ----- fully fused Pallas kernel ----------------------------------------------
def gpt2_fused_kernel(x_ref, wqkv_ref, wo_ref, wfc_ref, wpo_ref, wte_t_ref,
                      small_ref, o_ref):
    x = x_ref[...]                                           # (B*T, D) f32 residual stream

    # causal mask, hoisted once (broadcasts are not CSE'd -> build outside the loops)
    rows = lax.broadcasted_iota(jnp.int32, (SEQ, SEQ), 0)
    cols = lax.broadcasted_iota(jnp.int32, (SEQ, SEQ), 1)
    mask = jnp.broadcast_to((cols <= rows)[None, :, :], (BATCH, SEQ, SEQ))
    neg = jnp.float32(-1e30)

    def vec(row, width):                                     # (1, width) f32 packed-param slice
        return small_ref[row:row + 1, :width]

    for l in range(N_LAYER):                                 # static unroll over layers
        base = l * ROWS_PER_LAYER

        # --- attention sub-block (pre-LN); SCALE already folded into the Q columns ---
        h = _layernorm(x, vec(base + ROW_LN1G, D_MODEL),
                       vec(base + ROW_LN1B, D_MODEL)).astype(jnp.bfloat16)
        qkv = (jnp.dot(h, wqkv_ref[l], preferred_element_type=jnp.float32)
               + vec(base + ROW_BQKV, 3 * D_MODEL))          # (B*T, 3D) f32
        qkv = qkv.reshape(BATCH, SEQ, 3 * D_MODEL).astype(jnp.bfloat16)

        ctx_heads = []
        for hd in range(N_HEAD):                             # heads = static lane slices (no reshapes)
            q = qkv[:, :, 0 * D_MODEL + hd * D_HEAD: 0 * D_MODEL + (hd + 1) * D_HEAD]
            k = qkv[:, :, 1 * D_MODEL + hd * D_HEAD: 1 * D_MODEL + (hd + 1) * D_HEAD]
            v = qkv[:, :, 2 * D_MODEL + hd * D_HEAD: 2 * D_MODEL + (hd + 1) * D_HEAD]

            s = jnp.einsum('btd,bsd->bts', q, k, preferred_element_type=jnp.float32)
            s = jnp.where(mask, s, neg)
            s = s - jnp.max(s, axis=-1, keepdims=True)
            p = jnp.exp(s)
            p = p * pl.reciprocal(jnp.sum(p, axis=-1, keepdims=True), approx=True)

            ctx_heads.append(jnp.einsum('bts,bsd->btd', p.astype(jnp.bfloat16), v,
                                        preferred_element_type=jnp.float32))

        # head "concat" on the lane axis (head-major), then ONE lane-dense output projection
        ctx = jnp.concatenate(ctx_heads, axis=-1)            # (B, T, D) f32
        ctx = ctx.reshape(BATCH * SEQ, D_MODEL).astype(jnp.bfloat16)
        attn = jnp.dot(ctx, wo_ref[l], preferred_element_type=jnp.float32)
        x = x + attn + vec(base + ROW_BO, D_MODEL)

        # --- MLP sub-block (pre-LN) ---
        h2 = _layernorm(x, vec(base + ROW_LN2G, D_MODEL),
                        vec(base + ROW_LN2B, D_MODEL)).astype(jnp.bfloat16)
        ff = (jnp.dot(h2, wfc_ref[l], preferred_element_type=jnp.float32)
              + vec(base + ROW_BFC, D_FF))
        ff = _gelu_new(ff).astype(jnp.bfloat16)
        x = x + (jnp.dot(ff, wpo_ref[l], preferred_element_type=jnp.float32)
                 + vec(base + ROW_BPO, D_MODEL))

    # --- final LN + tied LM head (lane-dense (B*T, 128) f32 output) ---
    fin = N_LAYER * ROWS_PER_LAYER
    hf = _layernorm(x, vec(fin + 0, D_MODEL), vec(fin + 1, D_MODEL)).astype(jnp.bfloat16)
    o_ref[...] = jnp.dot(hf, wte_t_ref[...], preferred_element_type=jnp.float32)


# ----- wrapper ------------------------------------------------------------------
_PARAM_ORDER = ("wqkv", "wo", "w_fc", "w_po", "wte_t", "small")


@jax.jit
def gpt2_forward(input_ids, params):
    # embedding lookup (gather) is glue in plain JAX
    tok = jnp.take(params["wte"], input_ids, axis=0)                 # (B, T, D)
    pos = params["wpe"][:input_ids.shape[1]][None, :, :]             # (1, T, D)
    x = (tok + pos).astype(jnp.float32).reshape(BATCH * SEQ, D_MODEL)

    vmem = pl.BlockSpec(memory_space=pltpu.MemorySpace.VMEM)         # everything VMEM-resident
    logits = pl.pallas_call(
        gpt2_fused_kernel,
        out_shape=jax.ShapeDtypeStruct((BATCH * SEQ, VOCAB), jnp.float32),
        in_specs=[vmem] * (1 + len(_PARAM_ORDER)),
        out_specs=vmem,
    )(x, *[params[name] for name in _PARAM_ORDER])
    return logits.reshape(BATCH, SEQ, VOCAB)


# ----- deterministic parameter init (GPT-2 style: N(0, 0.02), LN = ones/zeros) --
# TODO(synk): real GPT2LMHeadModel.from_pretrained weight loading is replaced by random init.
def init_params(key):
    def normal(k, shape):
        return (0.02 * jax.random.normal(k, shape)).astype(jnp.float32)

    def pad_row(v):
        v = jnp.asarray(v, jnp.float32).reshape(-1)
        return jnp.pad(v, (0, SMALL_W - v.shape[0]))

    keys = jax.random.split(key, 2 + N_LAYER)
    wte = normal(keys[0], (VOCAB, D_MODEL))
    wpe = normal(keys[1], (MAX_POS, D_MODEL))

    wqkv, wo, wfc, wpo, small_rows = [], [], [], [], []
    for l in range(N_LAYER):
        k0, k1, k2, k3 = jax.random.split(keys[2 + l], 4)
        # HF c_attn layout: (D, 3D) = [Q | K | V], head-major columns within each section.
        w_qkv = normal(k0, (D_MODEL, 3 * D_MODEL))
        b_qkv = jnp.zeros((3 * D_MODEL,), jnp.float32)
        # fold the 1/sqrt(d_head) attention scale into the Q projection (weights AND bias)
        w_qkv = w_qkv.at[:, :D_MODEL].multiply(SCALE)
        b_qkv = b_qkv.at[:D_MODEL].multiply(SCALE)
        w_ao = normal(k1, (D_MODEL, D_MODEL))      # HF c_proj: rows = head-major concat of heads

        wqkv.append(w_qkv)
        wo.append(w_ao)
        wfc.append(normal(k2, (D_MODEL, D_FF)))
        wpo.append(normal(k3, (D_FF, D_MODEL)))

        small_rows += [
            pad_row(jnp.ones((D_MODEL,))),   # ln1_g
            pad_row(jnp.zeros((D_MODEL,))),  # ln1_b
            pad_row(b_qkv),                  # b_qkv (Q part pre-scaled)
            pad_row(jnp.zeros((D_MODEL,))),  # b_o
            pad_row(jnp.ones((D_MODEL,))),   # ln2_g
            pad_row(jnp.zeros((D_MODEL,))),  # ln2_b
            pad_row(jnp.zeros((D_FF,))),     # b_fc
            pad_row(jnp.zeros((D_MODEL,))),  # b_po
        ]
    small_rows += [pad_row(jnp.ones((D_MODEL,))),   # ln_f_g
                   pad_row(jnp.zeros((D_MODEL,)))]  # ln_f_b

    params = {
        # bf16 operands for every MXU matmul; packed biases / LN params stay f32
        "wqkv": jnp.stack(wqkv).astype(jnp.bfloat16),        # (L, 32, 96)
        "wo":   jnp.stack(wo).astype(jnp.bfloat16),          # (L, 32, 32)
        "w_fc": jnp.stack(wfc).astype(jnp.bfloat16),         # (L, 32, 128)
        "w_po": jnp.stack(wpo).astype(jnp.bfloat16),         # (L, 128, 32)
        "wte":  wte,                                         # f32 table for the embedding gather
        "wte_t": wte.T.astype(jnp.bfloat16),                 # pre-transposed ONCE (tied LM head)
        "wpe":  wpe,
        "small": jnp.stack(small_rows),                      # (N_LAYER*8+2, 128) f32
    }
    assert params["small"].shape == (N_SMALL_ROWS, SMALL_W)
    return params


if __name__ == "__main__":
    key = jax.random.PRNGKey(0)
    pkey, ikey = jax.random.split(key)
    params = init_params(pkey)
    input_ids = jax.random.randint(ikey, (BATCH, SEQ), 0, VOCAB, dtype=jnp.int32)

    logits = gpt2_forward(input_ids, params)
    logits = jax.block_until_ready(logits)

    assert logits.shape == (BATCH, SEQ, VOCAB), logits.shape
    assert bool(jnp.all(jnp.isfinite(logits)))
    print("KERNEL_OK")
</pallas_src>

<mosaic_0001>
module attributes {stable_mosaic.version = 11 : i64} {
  func.func @gpt2_fused_kernel(%arg0: memref<16x32xf32, #tpu.memory_space<vmem>>, %arg1: memref<2x32x96xbf16, #tpu.memory_space<vmem>>, %arg2: memref<2x32x32xbf16, #tpu.memory_space<vmem>>, %arg3: memref<2x32x128xbf16, #tpu.memory_space<vmem>>, %arg4: memref<2x128x32xbf16, #tpu.memory_space<vmem>>, %arg5: memref<32x128xbf16, #tpu.memory_space<vmem>>, %arg6: memref<18x128xf32, #tpu.memory_space<vmem>>, %arg7: memref<16x128xf32, #tpu.memory_space<vmem>>) attributes {dimension_semantics = [], scalar_prefetch = 0 : i64, scratch_operands = 0 : i64, tpu.core_type = #tpu.core_type<tc>} {
    %c0 = arith.constant 0 : index
    %c0_0 = arith.constant 0 : index
    %0 = vector.load %arg0[%c0, %c0_0] : memref<16x32xf32, #tpu.memory_space<vmem>>, vector<16x32xf32>
    %1 = tpu.iota {dimensions = array<i32: 0>} : vector<8x8xi32>
    %2 = tpu.iota {dimensions = array<i32: 1>} : vector<8x8xi32>
    %3 = arith.cmpi sle, %2, %1 : vector<8x8xi32>
    %4 = vector.shape_cast %3 : vector<8x8xi1> to vector<1x8x8xi1>
    %5 = vector.shape_cast %4 : vector<1x8x8xi1> to vector<1x8x8xi1>
    %6 = vector.broadcast %5 : vector<1x8x8xi1> to vector<2x8x8xi1>
    %c0_1 = arith.constant 0 : index
    %c0_2 = arith.constant 0 : index
    %7 = vector.load %arg6[%c0_1, %c0_2] : memref<18x128xf32, #tpu.memory_space<vmem>>, vector<1x32xf32>
    %c1 = arith.constant 1 : index
    %c0_3 = arith.constant 0 : index
    %8 = vector.load %arg6[%c1, %c0_3] : memref<18x128xf32, #tpu.memory_space<vmem>>, vector<1x32xf32>
    %cst = arith.constant dense<0.000000e+00> : vector<16xf32>
    %9 = vector.multi_reduction <add>, %0, %cst [1] : vector<16x32xf32> to vector<16xf32>
    %10 = vector.shape_cast %9 : vector<16xf32> to vector<16x1xf32>
    %cst_4 = arith.constant 3.200000e+01 : f32
    %11 = vector.broadcast %cst_4 : f32 to vector<16x1xf32>
    %12 = arith.divf %10, %11 : vector<16x1xf32>
    %13 = vector.broadcast %12 : vector<16x1xf32> to vector<16x32xf32>
    %14 = arith.subf %0, %13 : vector<16x32xf32>
    %15 = arith.mulf %14, %14 : vector<16x32xf32>
    %cst_5 = arith.constant dense<0.000000e+00> : vector<16xf32>
    %16 = vector.multi_reduction <add>, %15, %cst_5 [1] : vector<16x32xf32> to vector<16xf32>
    %17 = vector.shape_cast %16 : vector<16xf32> to vector<16x1xf32>
    %cst_6 = arith.constant 3.200000e+01 : f32
    %18 = vector.broadcast %cst_6 : f32 to vector<16x1xf32>
    %19 = arith.divf %17, %18 : vector<16x1xf32>
    %20 = vector.broadcast %12 : vector<16x1xf32> to vector<16x32xf32>
    %21 = arith.subf %0, %20 : vector<16x32xf32>
    %cst_7 = arith.constant 9.99999974E-6 : f32
    %22 = vector.broadcast %cst_7 : f32 to vector<16x1xf32>
    %23 = arith.addf %19, %22 : vector<16x1xf32>
    %24 = math.rsqrt %23 : vector<16x1xf32>
    %25 = vector.broadcast %24 : vector<16x1xf32> to vector<16x32xf32>
    %26 = arith.mulf %21, %25 : vector<16x32xf32>
    %27 = vector.broadcast %7 : vector<1x32xf32> to vector<16x32xf32>
    %28 = arith.mulf %26, %27 : vector<16x32xf32>
    %29 = vector.broadcast %8 : vector<1x32xf32> to vector<16x32xf32>
    %30 = arith.addf %28, %29 : vector<16x32xf32>
    %31 = arith.truncf %30 : vector<16x32xf32> to vector<16x32xbf16>
    %c0_8 = arith.constant 0 : index
    %c0_9 = arith.constant 0 : index
    %c0_10 = arith.constant 0 : index
    %32 = vector.load %arg1[%c0_8, %c0_9, %c0_10] : memref<2x32x96xbf16, #tpu.memory_space<vmem>>, vector<1x32x96xbf16>
    %33 = vector.shape_cast %32 : vector<1x32x96xbf16> to vector<32x96xbf16>
    %cst_11 = arith.constant dense<0.000000e+00> : vector<16x96xf32>
    %34 = tpu.matmul %31, %33, %cst_11 {dimension_numbers = #tpu.dot_dimension_numbers<[1], [0], [0], [1], [0, 0, 1, 1], [], []>} : vector<16x32xbf16>, vector<32x96xbf16>, vector<16x96xf32> -> vector<16x96xf32>
    %c2 = arith.constant 2 : index
    %c0_12 = arith.constant 0 : index
    %35 = vector.load %arg6[%c2, %c0_12] : memref<18x128xf32, #tpu.memory_space<vmem>>, vector<1x96xf32>
    %36 = vector.broadcast %35 : vector<1x96xf32> to vector<16x96xf32>
    %37 = arith.addf %34, %36 : vector<16x96xf32>
    %38 = vector.shape_cast %37 : vector<16x96xf32> to vector<2x8x96xf32>
    %39 = arith.truncf %38 : vector<2x8x96xf32> to vector<2x8x96xbf16>
    %40 = vector.extract_strided_slice %39 {offsets = [0, 0, 0], sizes = [2, 8, 8], strides = [1, 1, 1]} : vector<2x8x96xbf16> to vector<2x8x8xbf16>
    %41 = vector.extract_strided_slice %39 {offsets = [0, 0, 32], sizes = [2, 8, 8], strides = [1, 1, 1]} : vector<2x8x96xbf16> to vector<2x8x8xbf16>
    %42 = vector.extract_strided_slice %39 {offsets = [0, 0, 64], sizes = [2, 8, 8], strides = [1, 1, 1]} : vector<2x8x96xbf16> to vector<2x8x8xbf16>
    "tpu.trace_start"() <{level = 10 : i32, message = "btd,bsd->bts"}> : () -> ()
    %cst_13 = arith.constant dense<0.000000e+00> : vector<2x8x8xf32>
    %43 = tpu.matmul %40, %41, %cst_13 {dimension_numbers = #tpu.dot_dimension_numbers<[2], [2], [1], [1], [0, 0, 0, 1, 1, 1], [0], [0]>} : vector<2x8x8xbf16>, vector<2x8x8xbf16>, vector<2x8x8xf32> -> vector<2x8x8xf32>
    %cst_14 = arith.constant -1.000000e+30 : f32
    "tpu.trace_stop"() : () -> ()
    %44 = vector.broadcast %cst_14 : f32 to vector<2x8x8xf32>
    %45 = arith.select %6, %43, %44 : vector<2x8x8xi1>, vector<2x8x8xf32>
    %cst_15 = arith.constant dense<0xFF800000> : vector<2x8xf32>
    %46 = vector.multi_reduction <maximumf>, %45, %cst_15 [2] : vector<2x8x8xf32> to vector<2x8xf32>
    %47 = vector.shape_cast %46 : vector<2x8xf32> to vector<2x8x1xf32>
    %48 = vector.broadcast %47 : vector<2x8x1xf32> to vector<2x8x8xf32>
    %49 = arith.subf %45, %48 : vector<2x8x8xf32>
    %50 = math.exp %49 : vector<2x8x8xf32>
    %cst_16 = arith.constant dense<0.000000e+00> : vector<2x8xf32>
    %51 = vector.multi_reduction <add>, %50, %cst_16 [2] : vector<2x8x8xf32> to vector<2x8xf32>
    %52 = vector.shape_cast %51 : vector<2x8xf32> to vector<2x8x1xf32>
    %53 = tpu.reciprocal %52 {approx = true} : vector<2x8x1xf32> -> vector<2x8x1xf32>
    %54 = vector.broadcast %53 : vector<2x8x1xf32> to vector<2x8x8xf32>
    %55 = arith.mulf %50, %54 : vector<2x8x8xf32>
    %56 = arith.truncf %55 : vector<2x8x8xf32> to vector<2x8x8xbf16>
    "tpu.trace_start"() <{level = 10 : i32, message = "bts,bsd->btd"}> : () -> ()
    %cst_17 = arith.constant dense<0.000000e+00> : vector<2x8x8xf32>
    %57 = tpu.matmul %56, %42, %cst_17 {dimension_numbers = #tpu.dot_dimension_numbers<[2], [1], [1], [2], [0, 0, 0, 1, 1, 2], [0], [0]>} : vector<2x8x8xbf16>, vector<2x8x8xbf16>, vector<2x8x8xf32> -> vector<2x8x8xf32>
    "tpu.trace_stop"() : () -> ()
    %58 = vector.extract_strided_slice %39 {offsets = [0, 0, 8], sizes = [2, 8, 8], strides = [1, 1, 1]} : vector<2x8x96xbf16> to vector<2x8x8xbf16>
    %59 = vector.extract_strided_slice %39 {offsets = [0, 0, 40], sizes = [2, 8, 8], strides = [1, 1, 1]} : vector<2x8x96xbf16> to vector<2x8x8xbf16>
    %60 = vector.extract_strided_slice %39 {offsets = [0, 0, 72], sizes = [2, 8, 8], strides = [1, 1, 1]} : vector<2x8x96xbf16> to vector<2x8x8xbf16>
    "tpu.trace_start"() <{level = 10 : i32, message = "btd,bsd->bts"}> : () -> ()
    %cst_18 = arith.constant dense<0.000000e+00> : vector<2x8x8xf32>
    %61 = tpu.matmul %58, %59, %cst_18 {dimension_numbers = #tpu.dot_dimension_numbers<[2], [2], [1], [1], [0, 0, 0, 1, 1, 1], [0], [0]>} : vector<2x8x8xbf16>, vector<2x8x8xbf16>, vector<2x8x8xf32> -> vector<2x8x8xf32>
    %cst_19 = arith.constant -1.000000e+30 : f32
    "tpu.trace_stop"() : () -> ()
    %62 = vector.broadcast %cst_19 : f32 to vector<2x8x8xf32>
    %63 = arith.select %6, %61, %62 : vector<2x8x8xi1>, vector<2x8x8xf32>
    %cst_20 = arith.constant dense<0xFF800000> : vector<2x8xf32>
    %64 = vector.multi_reduction <maximumf>, %63, %cst_20 [2] : vector<2x8x8xf32> to vector<2x8xf32>
    %65 = vector.shape_cast %64 : vector<2x8xf32> to vector<2x8x1xf32>
    %66 = vector.broadcast %65 : vector<2x8x1xf32> to vector<2x8x8xf32>
    %67 = arith.subf %63, %66 : vector<2x8x8xf32>
    %68 = math.exp %67 : vector<2x8x8xf32>
    %cst_21 = arith.constant dense<0.000000e+00> : vector<2x8xf32>
    %69 = vector.multi_reduction <add>, %68, %cst_21 [2] : vector<2x8x8xf32> to vector<2x8xf32>
    %70 = vector.shape_cast %69 : vector<2x8xf32> to vector<2x8x1xf32>
    %71 = tpu.reciprocal %70 {approx = true} : vector<2x8x1xf32> -> vector<2x8x1xf32>
    %72 = vector.broadcast %71 : vector<2x8x1xf32> to vector<2x8x8xf32>
    %73 = arith.mulf %68, %72 : vector<2x8x8xf32>
    %74 = arith.truncf %73 : vector<2x8x8xf32> to vector<2x8x8xbf16>
    "tpu.trace_start"() <{level = 10 : i32, message = "bts,bsd->btd"}> : () -> ()
    %cst_22 = arith.constant dense<0.000000e+00> : vector<2x8x8xf32>
    %75 = tpu.matmul %74, %60, %cst_22 {dimension_numbers = #tpu.dot_dimension_numbers<[2], [1], [1], [2], [0, 0, 0, 1, 1, 2], [0], [0]>} : vector<2x8x8xbf16>, vector<2x8x8xbf16>, vector<2x8x8xf32> -> vector<2x8x8xf32>
    "tpu.trace_stop"() : () -> ()
    %76 = vector.extract_strided_slice %39 {offsets = [0, 0, 16], sizes = [2, 8, 8], strides = [1, 1, 1]} : vector<2x8x96xbf16> to vector<2x8x8xbf16>
    %77 = vector.extract_strided_slice %39 {offsets = [0, 0, 48], sizes = [2, 8, 8], strides = [1, 1, 1]} : vector<2x8x96xbf16> to vector<2x8x8xbf16>
    %78 = vector.extract_strided_slice %39 {offsets = [0, 0, 80], sizes = [2, 8, 8], strides = [1, 1, 1]} : vector<2x8x96xbf16> to vector<2x8x8xbf16>
    "tpu.trace_start"() <{level = 10 : i32, message = "btd,bsd->bts"}> : () -> ()
    %cst_23 = arith.constant dense<0.000000e+00> : vector<2x8x8xf32>
    %79 = tpu.matmul %76, %77, %cst_23 {dimension_numbers = #tpu.dot_dimension_numbers<[2], [2], [1], [1], [0, 0, 0, 1, 1, 1], [0], [0]>} : vector<2x8x8xbf16>, vector<2x8x8xbf16>, vector<2x8x8xf32> -> vector<2x8x8xf32>
    %cst_24 = arith.constant -1.000000e+30 : f32
    "tpu.trace_stop"() : () -> ()
    %80 = vector.broadcast %cst_24 : f32 to vector<2x8x8xf32>
    %81 = arith.select %6, %79, %80 : vector<2x8x8xi1>, vector<2x8x8xf32>
    %cst_25 = arith.constant dense<0xFF800000> : vector<2x8xf32>
    %82 = vector.multi_reduction <maximumf>, %81, %cst_25 [2] : vector<2x8x8xf32> to vector<2x8xf32>
    %83 = vector.shape_cast %82 : vector<2x8xf32> to vector<2x8x1xf32>
    %84 = vector.broadcast %83 : vector<2x8x1xf32> to vector<2x8x8xf32>
    %85 = arith.subf %81, %84 : vector<2x8x8xf32>
    %86 = math.exp %85 : vector<2x8x8xf32>
    %cst_26 = arith.constant dense<0.000000e+00> : vector<2x8xf32>
    %87 = vector.multi_reduction <add>, %86, %cst_26 [2] : vector<2x8x8xf32> to vector<2x8xf32>
    %88 = vector.shape_cast %87 : vector<2x8xf32> to vector<2x8x1xf32>
    %89 = tpu.reciprocal %88 {approx = true} : vector<2x8x1xf32> -> vector<2x8x1xf32>
    %90 = vector.broadcast %89 : vector<2x8x1xf32> to vector<2x8x8xf32>
    %91 = arith.mulf %86, %90 : vector<2x8x8xf32>
    %92 = arith.truncf %91 : vector<2x8x8xf32> to vector<2x8x8xbf16>
    "tpu.trace_start"() <{level = 10 : i32, message = "bts,bsd->btd"}> : () -> ()
    %cst_27 = arith.constant dense<0.000000e+00> : vector<2x8x8xf32>
    %93 = tpu.matmul %92, %78, %cst_27 {dimension_numbers = #tpu.dot_dimension_numbers<[2], [1], [1], [2], [0, 0, 0, 1, 1, 2], [0], [0]>} : vector<2x8x8xbf16>, vector<2x8x8xbf16>, vector<2x8x8xf32> -> vector<2x8x8xf32>
    "tpu.trace_stop"() : () -> ()
    %94 = vector.extract_strided_slice %39 {offsets = [0, 0, 24], sizes = [2, 8, 8], strides = [1, 1, 1]} : vector<2x8x96xbf16> to vector<2x8x8xbf16>
    %95 = vector.extract_strided_slice %39 {offsets = [0, 0, 56], sizes = [2, 8, 8], strides = [1, 1, 1]} : vector<2x8x96xbf16> to vector<2x8x8xbf16>
    %96 = vector.extract_strided_slice %39 {offsets = [0, 0, 88], sizes = [2, 8, 8], strides = [1, 1, 1]} : vector<2x8x96xbf16> to vector<2x8x8xbf16>
    "tpu.trace_start"() <{level = 10 : i32, message = "btd,bsd->bts"}> : () -> ()
    %cst_28 = arith.constant dense<0.000000e+00> : vector<2x8x8xf32>
    %97 = tpu.matmul %94, %95, %cst_28 {dimension_numbers = #tpu.dot_dimension_numbers<[2], [2], [1], [1], [0, 0, 0, 1, 1, 1], [0], [0]>} : vector<2x8x8xbf16>, vector<2x8x8xbf16>, vector<2x8x8xf32> -> vector<2x8x8xf32>
    %cst_29 = arith.constant -1.000000e+30 : f32
    "tpu.trace_stop"() : () -> ()
    %98 = vector.broadcast %cst_29 : f32 to vector<2x8x8xf32>
    %99 = arith.select %6, %97, %98 : vector<2x8x8xi1>, vector<2x8x8xf32>
    %cst_30 = arith.constant dense<0xFF800000> : vector<2x8xf32>
    %100 = vector.multi_reduction <maximumf>, %99, %cst_30 [2] : vector<2x8x8xf32> to vector<2x8xf32>
    %101 = vector.shape_cast %100 : vector<2x8xf32> to vector<2x8x1xf32>
    %102 = vector.broadcast %101 : vector<2x8x1xf32> to vector<2x8x8xf32>
    %103 = arith.subf %99, %102 : vector<2x8x8xf32>
    %104 = math.exp %103 : vector<2x8x8xf32>
    %cst_31 = arith.constant dense<0.000000e+00> : vector<2x8xf32>
    %105 = vector.multi_reduction <add>, %104, %cst_31 [2] : vector<2x8x8xf32> to vector<2x8xf32>
    %106 = vector.shape_cast %105 : vector<2x8xf32> to vector<2x8x1xf32>
    %107 = tpu.reciprocal %106 {approx = true} : vector<2x8x1xf32> -> vector<2x8x1xf32>
    %108 = vector.broadcast %107 : vector<2x8x1xf32> to vector<2x8x8xf32>
    %109 = arith.mulf %104, %108 : vector<2x8x8xf32>
    %110 = arith.truncf %109 : vector<2x8x8xf32> to vector<2x8x8xbf16>
    "tpu.trace_start"() <{level = 10 : i32, message = "bts,bsd->btd"}> : () -> ()
    %cst_32 = arith.constant dense<0.000000e+00> : vector<2x8x8xf32>
    %111 = tpu.matmul %110, %96, %cst_32 {dimension_numbers = #tpu.dot_dimension_numbers<[2], [1], [1], [2], [0, 0, 0, 1, 1, 2], [0], [0]>} : vector<2x8x8xbf16>, vector<2x8x8xbf16>, vector<2x8x8xf32> -> vector<2x8x8xf32>
    "tpu.trace_stop"() : () -> ()
    %112 = tpu.concatenate %57, %75, %93, %111 in 2 : vector<2x8x8xf32>, vector<2x8x8xf32>, vector<2x8x8xf32>, vector<2x8x8xf32> -> vector<2x8x32xf32>
    %113 = vector.shape_cast %112 : vector<2x8x32xf32> to vector<16x32xf32>
    %114 = arith.truncf %113 : vector<16x32xf32> to vector<16x32xbf16>
    %c0_33 = arith.constant 0 : index
    %c0_34 = arith.constant 0 : index
    %c0_35 = arith.constant 0 : index
    %115 = vector.load %arg2[%c0_33, %c0_34, %c0_35] : memref<2x32x32xbf16, #tpu.memory_space<vmem>>, vector<1x32x32xbf16>
    %116 = vector.shape_cast %115 : vector<1x32x32xbf16> to vector<32x32xbf16>
    %cst_36 = arith.constant dense<0.000000e+00> : vector<16x32xf32>
    %117 = tpu.matmul %114, %116, %cst_36 {dimension_numbers = #tpu.dot_dimension_numbers<[1], [0], [0], [1], [0, 0, 1, 1], [], []>} : vector<16x32xbf16>, vector<32x32xbf16>, vector<16x32xf32> -> vector<16x32xf32>
    %118 = arith.addf %0, %117 : vector<16x32xf32>
    %c3 = arith.constant 3 : index
    %c0_37 = arith.constant 0 : index
    %119 = vector.load %arg6[%c3, %c0_37] : memref<18x128xf32, #tpu.memory_space<vmem>>, vector<1x32xf32>
    %120 = vector.broadcast %119 : vector<1x32xf32> to vector<16x32xf32>
    %121 = arith.addf %118, %120 : vector<16x32xf32>
    %c4 = arith.constant 4 : index
    %c0_38 = arith.constant 0 : index
    %122 = vector.load %arg6[%c4, %c0_38] : memref<18x128xf32, #tpu.memory_space<vmem>>, vector<1x32xf32>
    %c5 = arith.constant 5 : index
    %c0_39 = arith.constant 0 : index
    %123 = vector.load %arg6[%c5, %c0_39] : memref<18x128xf32, #tpu.memory_space<vmem>>, vector<1x32xf32>
    %cst_40 = arith.constant dense<0.000000e+00> : vector<16xf32>
    %124 = vector.multi_reduction <add>, %121, %cst_40 [1] : vector<16x32xf32> to vector<16xf32>
    %125 = vector.shape_cast %124 : vector<16xf32> to vector<16x1xf32>
    %cst_41 = arith.constant 3.200000e+01 : f32
    %126 = vector.broadcast %cst_41 : f32 to vector<16x1xf32>
    %127 = arith.divf %125, %126 : vector<16x1xf32>
    %128 = vector.broadcast %127 : vector<16x1xf32> to vector<16x32xf32>
    %129 = arith.subf %121, %128 : vector<16x32xf32>
    %130 = arith.mulf %129, %129 : vector<16x32xf32>
    %cst_42 = arith.constant dense<0.000000e+00> : vector<16xf32>
    %131 = vector.multi_reduction <add>, %130, %cst_42 [1] : vector<16x32xf32> to vector<16xf32>
    %132 = vector.shape_cast %131 : vector<16xf32> to vector<16x1xf32>
    %cst_43 = arith.constant 3.200000e+01 : f32
    %133 = vector.broadcast %cst_43 : f32 to vector<16x1xf32>
    %134 = arith.divf %132, %133 : vector<16x1xf32>
    %135 = vector.broadcast %127 : vector<16x1xf32> to vector<16x32xf32>
    %136 = arith.subf %121, %135 : vector<16x32xf32>
    %cst_44 = arith.constant 9.99999974E-6 : f32
    %137 = vector.broadcast %cst_44 : f32 to vector<16x1xf32>
    %138 = arith.addf %134, %137 : vector<16x1xf32>
    %139 = math.rsqrt %138 : vector<16x1xf32>
    %140 = vector.broadcast %139 : vector<16x1xf32> to vector<16x32xf32>
    %141 = arith.mulf %136, %140 : vector<16x32xf32>
    %142 = vector.broadcast %122 : vector<1x32xf32> to vector<16x32xf32>
    %143 = arith.mulf %141, %142 : vector<16x32xf32>
    %144 = vector.broadcast %123 : vector<1x32xf32> to vector<16x32xf32>
    %145 = arith.addf %143, %144 : vector<16x32xf32>
    %146 = arith.truncf %145 : vector<16x32xf32> to vector<16x32xbf16>
    %c0_45 = arith.constant 0 : index
    %c0_46 = arith.constant 0 : index
    %c0_47 = arith.constant 0 : index
    %147 = vector.load %arg3[%c0_45, %c0_46, %c0_47] : memref<2x32x128xbf16, #tpu.memory_space<vmem>>, vector<1x32x128xbf16>
    %148 = vector.shape_cast %147 : vector<1x32x128xbf16> to vector<32x128xbf16>
    %cst_48 = arith.constant dense<0.000000e+00> : vector<16x128xf32>
    %149 = tpu.matmul %146, %148, %cst_48 {dimension_numbers = #tpu.dot_dimension_numbers<[1], [0], [0], [1], [0, 0, 1, 1], [], []>} : vector<16x32xbf16>, vector<32x128xbf16>, vector<16x128xf32> -> vector<16x128xf32>
    %c6 = arith.constant 6 : index
    %c0_49 = arith.constant 0 : index
    %150 = vector.load %arg6[%c6, %c0_49] : memref<18x128xf32, #tpu.memory_space<vmem>>, vector<1x128xf32>
    %151 = vector.broadcast %150 : vector<1x128xf32> to vector<16x128xf32>
    %152 = arith.addf %149, %151 : vector<16x128xf32>
    %cst_50 = arith.constant 5.000000e-01 : f32
    %153 = vector.broadcast %cst_50 : f32 to vector<16x128xf32>
    %154 = arith.mulf %153, %152 : vector<16x128xf32>
    %155 = arith.mulf %152, %152 : vector<16x128xf32>
    %156 = arith.mulf %152, %155 : vector<16x128xf32>
    %cst_51 = arith.constant 4.471500e-02 : f32
    %157 = vector.broadcast %cst_51 : f32 to vector<16x128xf32>
    %158 = arith.mulf %157, %156 : vector<16x128xf32>
    %159 = arith.addf %152, %158 : vector<16x128xf32>
    %cst_52 = arith.constant 0.797884583 : f32
    %160 = vector.broadcast %cst_52 : f32 to vector<16x128xf32>
    %161 = arith.mulf %160, %159 : vector<16x128xf32>
    %162 = math.tanh %161 : vector<16x128xf32>
    %cst_53 = arith.constant 1.000000e+00 : f32
    %163 = vector.broadcast %cst_53 : f32 to vector<16x128xf32>
    %164 = arith.addf %163, %162 : vector<16x128xf32>
    %165 = arith.mulf %154, %164 : vector<16x128xf32>
    %166 = arith.truncf %165 : vector<16x128xf32> to vector<16x128xbf16>
    %c0_54 = arith.constant 0 : index
    %c0_55 = arith.constant 0 : index
    %c0_56 = arith.constant 0 : index
    %167 = vector.load %arg4[%c0_54, %c0_55, %c0_56] : memref<2x128x32xbf16, #tpu.memory_space<vmem>>, vector<1x128x32xbf16>
    %168 = vector.shape_cast %167 : vector<1x128x32xbf16> to vector<128x32xbf16>
    %cst_57 = arith.constant dense<0.000000e+00> : vector<16x32xf32>
    %169 = tpu.matmul %166, %168, %cst_57 {dimension_numbers = #tpu.dot_dimension_numbers<[1], [0], [0], [1], [0, 0, 1, 1], [], []>} : vector<16x128xbf16>, vector<128x32xbf16>, vector<16x32xf32> -> vector<16x32xf32>
    %c7 = arith.constant 7 : index
    %c0_58 = arith.constant 0 : index
    %170 = vector.load %arg6[%c7, %c0_58] : memref<18x128xf32, #tpu.memory_space<vmem>>, vector<1x32xf32>
    %171 = vector.broadcast %170 : vector<1x32xf32> to vector<16x32xf32>
    %172 = arith.addf %169, %171 : vector<16x32xf32>
    %173 = arith.addf %121, %172 : vector<16x32xf32>
    %c8 = arith.constant 8 : index
    %c0_59 = arith.constant 0 : index
    %174 = vector.load %arg6[%c8, %c0_59] : memref<18x128xf32, #tpu.memory_space<vmem>>, vector<1x32xf32>
    %c9 = arith.constant 9 : index
    %c0_60 = arith.constant 0 : index
    %175 = vector.load %arg6[%c9, %c0_60] : memref<18x128xf32, #tpu.memory_space<vmem>>, vector<1x32xf32>
    %cst_61 = arith.constant dense<0.000000e+00> : vector<16xf32>
    %176 = vector.multi_reduction <add>, %173, %cst_61 [1] : vector<16x32xf32> to vector<16xf32>
    %177 = vector.shape_cast %176 : vector<16xf32> to vector<16x1xf32>
    %cst_62 = arith.constant 3.200000e+01 : f32
    %178 = vector.broadcast %cst_62 : f32 to vector<16x1xf32>
    %179 = arith.divf %177, %178 : vector<16x1xf32>
    %180 = vector.broadcast %179 : vector<16x1xf32> to vector<16x32xf32>
    %181 = arith.subf %173, %180 : vector<16x32xf32>
    %182 = arith.mulf %181, %181 : vector<16x32xf32>
    %cst_63 = arith.constant dense<0.000000e+00> : vector<16xf32>
    %183 = vector.multi_reduction <add>, %182, %cst_63 [1] : vector<16x32xf32> to vector<16xf32>
    %184 = vector.shape_cast %183 : vector<16xf32> to vector<16x1xf32>
    %cst_64 = arith.constant 3.200000e+01 : f32
    %185 = vector.broadcast %cst_64 : f32 to vector<16x1xf32>
    %186 = arith.divf %184, %185 : vector<16x1xf32>
    %187 = vector.broadcast %179 : vector<16x1xf32> to vector<16x32xf32>
    %188 = arith.subf %173, %187 : vector<16x32xf32>
    %cst_65 = arith.constant 9.99999974E-6 : f32
    %189 = vector.broadcast %cst_65 : f32 to vector<16x1xf32>
    %190 = arith.addf %186, %189 : vector<16x1xf32>
    %191 = math.rsqrt %190 : vector<16x1xf32>
    %192 = vector.broadcast %191 : vector<16x1xf32> to vector<16x32xf32>
    %193 = arith.mulf %188, %192 : vector<16x32xf32>
    %194 = vector.broadcast %174 : vector<1x32xf32> to vector<16x32xf32>
    %195 = arith.mulf %193, %194 : vector<16x32xf32>
    %196 = vector.broadcast %175 : vector<1x32xf32> to vector<16x32xf32>
    %197 = arith.addf %195, %196 : vector<16x32xf32>
    %198 = arith.truncf %197 : vector<16x32xf32> to vector<16x32xbf16>
    %c1_66 = arith.constant 1 : index
    %c0_67 = arith.constant 0 : index
    %c0_68 = arith.constant 0 : index
    %199 = vector.load %arg1[%c1_66, %c0_67, %c0_68] : memref<2x32x96xbf16, #tpu.memory_space<vmem>>, vector<1x32x96xbf16>
    %200 = vector.shape_cast %199 : vector<1x32x96xbf16> to vector<32x96xbf16>
    %cst_69 = arith.constant dense<0.000000e+00> : vector<16x96xf32>
    %201 = tpu.matmul %198, %200, %cst_69 {dimension_numbers = #tpu.dot_dimension_numbers<[1], [0], [0], [1], [0, 0, 1, 1], [], []>} : vector<16x32xbf16>, vector<32x96xbf16>, vector<16x96xf32> -> vector<16x96xf32>
    %c10 = arith.constant 10 : index
    %c0_70 = arith.constant 0 : index
    %202 = vector.load %arg6[%c10, %c0_70] : memref<18x128xf32, #tpu.memory_space<vmem>>, vector<1x96xf32>
    %203 = vector.broadcast %202 : vector<1x96xf32> to vector<16x96xf32>
    %204 = arith.addf %201, %203 : vector<16x96xf32>
    %205 = vector.shape_cast %204 : vector<16x96xf32> to vector<2x8x96xf32>
    %206 = arith.truncf %205 : vector<2x8x96xf32> to vector<2x8x96xbf16>
    %207 = vector.extract_strided_slice %206 {offsets = [0, 0, 0], sizes = [2, 8, 8], strides = [1, 1, 1]} : vector<2x8x96xbf16> to vector<2x8x8xbf16>
    %208 = vector.extract_strided_slice %206 {offsets = [0, 0, 32], sizes = [2, 8, 8], strides = [1, 1, 1]} : vector<2x8x96xbf16> to vector<2x8x8xbf16>
    %209 = vector.extract_strided_slice %206 {offsets = [0, 0, 64], sizes = [2, 8, 8], strides = [1, 1, 1]} : vector<2x8x96xbf16> to vector<2x8x8xbf16>
    "tpu.trace_start"() <{level = 10 : i32, message = "btd,bsd->bts"}> : () -> ()
    %cst_71 = arith.constant dense<0.000000e+00> : vector<2x8x8xf32>
    %210 = tpu.matmul %207, %208, %cst_71 {dimension_numbers = #tpu.dot_dimension_numbers<[2], [2], [1], [1], [0, 0, 0, 1, 1, 1], [0], [0]>} : vector<2x8x8xbf16>, vector<2x8x8xbf16>, vector<2x8x8xf32> -> vector<2x8x8xf32>
    %cst_72 = arith.constant -1.000000e+30 : f32
    "tpu.trace_stop"() : () -> ()
    %211 = vector.broadcast %cst_72 : f32 to vector<2x8x8xf32>
    %212 = arith.select %6, %210, %211 : vector<2x8x8xi1>, vector<2x8x8xf32>
    %cst_73 = arith.constant dense<0xFF800000> : vector<2x8xf32>
    %213 = vector.multi_reduction <maximumf>, %212, %cst_73 [2] : vector<2x8x8xf32> to vector<2x8xf32>
    %214 = vector.shape_cast %213 : vector<2x8xf32> to vector<2x8x1xf32>
    %215 = vector.broadcast %214 : vector<2x8x1xf32> to vector<2x8x8xf32>
    %216 = arith.subf %212, %215 : vector<2x8x8xf32>
    %217 = math.exp %216 : vector<2x8x8xf32>
    %cst_74 = arith.constant dense<0.000000e+00> : vector<2x8xf32>
    %218 = vector.multi_reduction <add>, %217, %cst_74 [2] : vector<2x8x8xf32> to vector<2x8xf32>
    %219 = vector.shape_cast %218 : vector<2x8xf32> to vector<2x8x1xf32>
    %220 = tpu.reciprocal %219 {approx = true} : vector<2x8x1xf32> -> vector<2x8x1xf32>
    %221 = vector.broadcast %220 : vector<2x8x1xf32> to vector<2x8x8xf32>
    %222 = arith.mulf %217, %221 : vector<2x8x8xf32>
    %223 = arith.truncf %222 : vector<2x8x8xf32> to vector<2x8x8xbf16>
    "tpu.trace_start"() <{level = 10 : i32, message = "bts,bsd->btd"}> : () -> ()
    %cst_75 = arith.constant dense<0.000000e+00> : vector<2x8x8xf32>
    %224 = tpu.matmul %223, %209, %cst_75 {dimension_numbers = #tpu.dot_dimension_numbers<[2], [1], [1], [2], [0, 0, 0, 1, 1, 2], [0], [0]>} : vector<2x8x8xbf16>, vector<2x8x8xbf16>, vector<2x8x8xf32> -> vector<2x8x8xf32>
    "tpu.trace_stop"() : () -> ()
    %225 = vector.extract_strided_slice %206 {offsets = [0, 0, 8], sizes = [2, 8, 8], strides = [1, 1, 1]} : vector<2x8x96xbf16> to vector<2x8x8xbf16>
    %226 = vector.extract_strided_slice %206 {offsets = [0, 0, 40], sizes = [2, 8, 8], strides = [1, 1, 1]} : vector<2x8x96xbf16> to vector<2x8x8xbf16>
    %227 = vector.extract_strided_slice %206 {offsets = [0, 0, 72], sizes = [2, 8, 8], strides = [1, 1, 1]} : vector<2x8x96xbf16> to vector<2x8x8xbf16>
    "tpu.trace_start"() <{level = 10 : i32, message = "btd,bsd->bts"}> : () -> ()
    %cst_76 = arith.constant dense<0.000000e+00> : vector<2x8x8xf32>
    %228 = tpu.matmul %225, %226, %cst_76 {dimension_numbers = #tpu.dot_dimension_numbers<[2], [2], [1], [1], [0, 0, 0, 1, 1, 1], [0], [0]>} : vector<2x8x8xbf16>, vector<2x8x8xbf16>, vector<2x8x8xf32> -> vector<2x8x8xf32>
    %cst_77 = arith.constant -1.000000e+30 : f32
    "tpu.trace_stop"() : () -> ()
    %229 = vector.broadcast %cst_77 : f32 to vector<2x8x8xf32>
    %230 = arith.select %6, %228, %229 : vector<2x8x8xi1>, vector<2x8x8xf32>
    %cst_78 = arith.constant dense<0xFF800000> : vector<2x8xf32>
    %231 = vector.multi_reduction <maximumf>, %230, %cst_78 [2] : vector<2x8x8xf32> to vector<2x8xf32>
    %232 = vector.shape_cast %231 : vector<2x8xf32> to vector<2x8x1xf32>
    %233 = vector.broadcast %232 : vector<2x8x1xf32> to vector<2x8x8xf32>
    %234 = arith.subf %230, %233 : vector<2x8x8xf32>
    %235 = math.exp %234 : vector<2x8x8xf32>
    %cst_79 = arith.constant dense<0.000000e+00> : vector<2x8xf32>
    %236 = vector.multi_reduction <add>, %235, %cst_79 [2] : vector<2x8x8xf32> to vector<2x8xf32>
    %237 = vector.shape_cast %236 : vector<2x8xf32> to vector<2x8x1xf32>
    %238 = tpu.reciprocal %237 {approx = true} : vector<2x8x1xf32> -> vector<2x8x1xf32>
    %239 = vector.broadcast %238 : vector<2x8x1xf32> to vector<2x8x8xf32>
    %240 = arith.mulf %235, %239 : vector<2x8x8xf32>
    %241 = arith.truncf %240 : vector<2x8x8xf32> to vector<2x8x8xbf16>
    "tpu.trace_start"() <{level = 10 : i32, message = "bts,bsd->btd"}> : () -> ()
    %cst_80 = arith.constant dense<0.000000e+00> : vector<2x8x8xf32>
    %242 = tpu.matmul %241, %227, %cst_80 {dimension_numbers = #tpu.dot_dimension_numbers<[2], [1], [1], [2], [0, 0, 0, 1, 1, 2], [0], [0]>} : vector<2x8x8xbf16>, vector<2x8x8xbf16>, vector<2x8x8xf32> -> vector<2x8x8xf32>
    "tpu.trace_stop"() : () -> ()
    %243 = vector.extract_strided_slice %206 {offsets = [0, 0, 16], sizes = [2, 8, 8], strides = [1, 1, 1]} : vector<2x8x96xbf16> to vector<2x8x8xbf16>
    %244 = vector.extract_strided_slice %206 {offsets = [0, 0, 48], sizes = [2, 8, 8], strides = [1, 1, 1]} : vector<2x8x96xbf16> to vector<2x8x8xbf16>
    %245 = vector.extract_strided_slice %206 {offsets = [0, 0, 80], sizes = [2, 8, 8], strides = [1, 1, 1]} : vector<2x8x96xbf16> to vector<2x8x8xbf16>
    "tpu.trace_start"() <{level = 10 : i32, message = "btd,bsd->bts"}> : () -> ()
    %cst_81 = arith.constant dense<0.000000e+00> : vector<2x8x8xf32>
    %246 = tpu.matmul %243, %244, %cst_81 {dimension_numbers = #tpu.dot_dimension_numbers<[2], [2], [1], [1], [0, 0, 0, 1, 1, 1], [0], [0]>} : vector<2x8x8xbf16>, vector<2x8x8xbf16>, vector<2x8x8xf32> -> vector<2x8x8xf32>
    %cst_82 = arith.constant -1.000000e+30 : f32
    "tpu.trace_stop"() : () -> ()
    %247 = vector.broadcast %cst_82 : f32 to vector<2x8x8xf32>
    %248 = arith.select %6, %246, %247 : vector<2x8x8xi1>, vector<2x8x8xf32>
    %cst_83 = arith.constant dense<0xFF800000> : vector<2x8xf32>
    %249 = vector.multi_reduction <maximumf>, %248, %cst_83 [2] : vector<2x8x8xf32> to vector<2x8xf32>
    %250 = vector.shape_cast %249 : vector<2x8xf32> to vector<2x8x1xf32>
    %251 = vector.broadcast %250 : vector<2x8x1xf32> to vector<2x8x8xf32>
    %252 = arith.subf %248, %251 : vector<2x8x8xf32>
    %253 = math.exp %252 : vector<2x8x8xf32>
    %cst_84 = arith.constant dense<0.000000e+00> : vector<2x8xf32>
    %254 = vector.multi_reduction <add>, %253, %cst_84 [2] : vector<2x8x8xf32> to vector<2x8xf32>
    %255 = vector.shape_cast %254 : vector<2x8xf32> to vector<2x8x1xf32>
    %256 = tpu.reciprocal %255 {approx = true} : vector<2x8x1xf32> -> vector<2x8x1xf32>
    %257 = vector.broadcast %256 : vector<2x8x1xf32> to vector<2x8x8xf32>
    %258 = arith.mulf %253, %257 : vector<2x8x8xf32>
    %259 = arith.truncf %258 : vector<2x8x8xf32> to vector<2x8x8xbf16>
    "tpu.trace_start"() <{level = 10 : i32, message = "bts,bsd->btd"}> : () -> ()
    %cst_85 = arith.constant dense<0.000000e+00> : vector<2x8x8xf32>
    %260 = tpu.matmul %259, %245, %cst_85 {dimension_numbers = #tpu.dot_dimension_numbers<[2], [1], [1], [2], [0, 0, 0, 1, 1, 2], [0], [0]>} : vector<2x8x8xbf16>, vector<2x8x8xbf16>, vector<2x8x8xf32> -> vector<2x8x8xf32>
    "tpu.trace_stop"() : () -> ()
    %261 = vector.extract_strided_slice %206 {offsets = [0, 0, 24], sizes = [2, 8, 8], strides = [1, 1, 1]} : vector<2x8x96xbf16> to vector<2x8x8xbf16>
    %262 = vector.extract_strided_slice %206 {offsets = [0, 0, 56], sizes = [2, 8, 8], strides = [1, 1, 1]} : vector<2x8x96xbf16> to vector<2x8x8xbf16>
    %263 = vector.extract_strided_slice %206 {offsets = [0, 0, 88], sizes = [2, 8, 8], strides = [1, 1, 1]} : vector<2x8x96xbf16> to vector<2x8x8xbf16>
    "tpu.trace_start"() <{level = 10 : i32, message = "btd,bsd->bts"}> : () -> ()
    %cst_86 = arith.constant dense<0.000000e+00> : vector<2x8x8xf32>
    %264 = tpu.matmul %261, %262, %cst_86 {dimension_numbers = #tpu.dot_dimension_numbers<[2], [2], [1], [1], [0, 0, 0, 1, 1, 1], [0], [0]>} : vector<2x8x8xbf16>, vector<2x8x8xbf16>, vector<2x8x8xf32> -> vector<2x8x8xf32>
    %cst_87 = arith.constant -1.000000e+30 : f32
    "tpu.trace_stop"() : () -> ()
    %265 = vector.broadcast %cst_87 : f32 to vector<2x8x8xf32>
    %266 = arith.select %6, %264, %265 : vector<2x8x8xi1>, vector<2x8x8xf32>
    %cst_88 = arith.constant dense<0xFF800000> : vector<2x8xf32>
    %267 = vector.multi_reduction <maximumf>, %266, %cst_88 [2] : vector<2x8x8xf32> to vector<2x8xf32>
    %268 = vector.shape_cast %267 : vector<2x8xf32> to vector<2x8x1xf32>
    %269 = vector.broadcast %268 : vector<2x8x1xf32> to vector<2x8x8xf32>
    %270 = arith.subf %266, %269 : vector<2x8x8xf32>
    %271 = math.exp %270 : vector<2x8x8xf32>
    %cst_89 = arith.constant dense<0.000000e+00> : vector<2x8xf32>
    %272 = vector.multi_reduction <add>, %271, %cst_89 [2] : vector<2x8x8xf32> to vector<2x8xf32>
    %273 = vector.shape_cast %272 : vector<2x8xf32> to vector<2x8x1xf32>
    %274 = tpu.reciprocal %273 {approx = true} : vector<2x8x1xf32> -> vector<2x8x1xf32>
    %275 = vector.broadcast %274 : vector<2x8x1xf32> to vector<2x8x8xf32>
    %276 = arith.mulf %271, %275 : vector<2x8x8xf32>
    %277 = arith.truncf %276 : vector<2x8x8xf32> to vector<2x8x8xbf16>
    "tpu.trace_start"() <{level = 10 : i32, message = "bts,bsd->btd"}> : () -> ()
    %cst_90 = arith.constant dense<0.000000e+00> : vector<2x8x8xf32>
    %278 = tpu.matmul %277, %263, %cst_90 {dimension_numbers = #tpu.dot_dimension_numbers<[2], [1], [1], [2], [0, 0, 0, 1, 1, 2], [0], [0]>} : vector<2x8x8xbf16>, vector<2x8x8xbf16>, vector<2x8x8xf32> -> vector<2x8x8xf32>
    "tpu.trace_stop"() : () -> ()
    %279 = tpu.concatenate %224, %242, %260, %278 in 2 : vector<2x8x8xf32>, vector<2x8x8xf32>, vector<2x8x8xf32>, vector<2x8x8xf32> -> vector<2x8x32xf32>
    %280 = vector.shape_cast %279 : vector<2x8x32xf32> to vector<16x32xf32>
    %281 = arith.truncf %280 : vector<16x32xf32> to vector<16x32xbf16>
    %c1_91 = arith.constant 1 : index
    %c0_92 = arith.constant 0 : index
    %c0_93 = arith.constant 0 : index
    %282 = vector.load %arg2[%c1_91, %c0_92, %c0_93] : memref<2x32x32xbf16, #tpu.memory_space<vmem>>, vector<1x32x32xbf16>
    %283 = vector.shape_cast %282 : vector<1x32x32xbf16> to vector<32x32xbf16>
    %cst_94 = arith.constant dense<0.000000e+00> : vector<16x32xf32>
    %284 = tpu.matmul %281, %283, %cst_94 {dimension_numbers = #tpu.dot_dimension_numbers<[1], [0], [0], [1], [0, 0, 1, 1], [], []>} : vector<16x32xbf16>, vector<32x32xbf16>, vector<16x32xf32> -> vector<16x32xf32>
    %285 = arith.addf %173, %284 : vector<16x32xf32>
    %c11 = arith.constant 11 : index
    %c0_95 = arith.constant 0 : index
    %286 = vector.load %arg6[%c11, %c0_95] : memref<18x128xf32, #tpu.memory_space<vmem>>, vector<1x32xf32>
    %287 = vector.broadcast %286 : vector<1x32xf32> to vector<16x32xf32>
    %288 = arith.addf %285, %287 : vector<16x32xf32>
    %c12 = arith.constant 12 : index
    %c0_96 = arith.constant 0 : index
    %289 = vector.load %arg6[%c12, %c0_96] : memref<18x128xf32, #tpu.memory_space<vmem>>, vector<1x32xf32>
    %c13 = arith.constant 13 : index
    %c0_97 = arith.constant 0 : index
    %290 = vector.load %arg6[%c13, %c0_97] : memref<18x128xf32, #tpu.memory_space<vmem>>, vector<1x32xf32>
    %cst_98 = arith.constant dense<0.000000e+00> : vector<16xf32>
    %291 = vector.multi_reduction <add>, %288, %cst_98 [1] : vector<16x32xf32> to vector<16xf32>
    %292 = vector.shape_cast %291 : vector<16xf32> to vector<16x1xf32>
    %cst_99 = arith.constant 3.200000e+01 : f32
    %293 = vector.broadcast %cst_99 : f32 to vector<16x1xf32>
    %294 = arith.divf %292, %293 : vector<16x1xf32>
    %295 = vector.broadcast %294 : vector<16x1xf32> to vector<16x32xf32>
    %296 = arith.subf %288, %295 : vector<16x32xf32>
    %297 = arith.mulf %296, %296 : vector<16x32xf32>
    %cst_100 = arith.constant dense<0.000000e+00> : vector<16xf32>
    %298 = vector.multi_reduction <add>, %297, %cst_100 [1] : vector<16x32xf32> to vector<16xf32>
    %299 = vector.shape_cast %298 : vector<16xf32> to vector<16x1xf32>
    %cst_101 = arith.constant 3.200000e+01 : f32
    %300 = vector.broadcast %cst_101 : f32 to vector<16x1xf32>
    %301 = arith.divf %299, %300 : vector<16x1xf32>
    %302 = vector.broadcast %294 : vector<16x1xf32> to vector<16x32xf32>
    %303 = arith.subf %288, %302 : vector<16x32xf32>
    %cst_102 = arith.constant 9.99999974E-6 : f32
    %304 = vector.broadcast %cst_102 : f32 to vector<16x1xf32>
    %305 = arith.addf %301, %304 : vector<16x1xf32>
    %306 = math.rsqrt %305 : vector<16x1xf32>
    %307 = vector.broadcast %306 : vector<16x1xf32> to vector<16x32xf32>
    %308 = arith.mulf %303, %307 : vector<16x32xf32>
    %309 = vector.broadcast %289 : vector<1x32xf32> to vector<16x32xf32>
    %310 = arith.mulf %308, %309 : vector<16x32xf32>
    %311 = vector.broadcast %290 : vector<1x32xf32> to vector<16x32xf32>
    %312 = arith.addf %310, %311 : vector<16x32xf32>
    %313 = arith.truncf %312 : vector<16x32xf32> to vector<16x32xbf16>
    %c1_103 = arith.constant 1 : index
    %c0_104 = arith.constant 0 : index
    %c0_105 = arith.constant 0 : index
    %314 = vector.load %arg3[%c1_103, %c0_104, %c0_105] : memref<2x32x128xbf16, #tpu.memory_space<vmem>>, vector<1x32x128xbf16>
    %315 = vector.shape_cast %314 : vector<1x32x128xbf16> to vector<32x128xbf16>
    %cst_106 = arith.constant dense<0.000000e+00> : vector<16x128xf32>
    %316 = tpu.matmul %313, %315, %cst_106 {dimension_numbers = #tpu.dot_dimension_numbers<[1], [0], [0], [1], [0, 0, 1, 1], [], []>} : vector<16x32xbf16>, vector<32x128xbf16>, vector<16x128xf32> -> vector<16x128xf32>
    %c14 = arith.constant 14 : index
    %c0_107 = arith.constant 0 : index
    %317 = vector.load %arg6[%c14, %c0_107] : memref<18x128xf32, #tpu.memory_space<vmem>>, vector<1x128xf32>
    %318 = vector.broadcast %317 : vector<1x128xf32> to vector<16x128xf32>
    %319 = arith.addf %316, %318 : vector<16x128xf32>
    %cst_108 = arith.constant 5.000000e-01 : f32
    %320 = vector.broadcast %cst_108 : f32 to vector<16x128xf32>
    %321 = arith.mulf %320, %319 : vector<16x128xf32>
    %322 = arith.mulf %319, %319 : vector<16x128xf32>
    %323 = arith.mulf %319, %322 : vector<16x128xf32>
    %cst_109 = arith.constant 4.471500e-02 : f32
    %324 = vector.broadcast %cst_109 : f32 to vector<16x128xf32>
    %325 = arith.mulf %324, %323 : vector<16x128xf32>
    %326 = arith.addf %319, %325 : vector<16x128xf32>
    %cst_110 = arith.constant 0.797884583 : f32
    %327 = vector.broadcast %cst_110 : f32 to vector<16x128xf32>
    %328 = arith.mulf %327, %326 : vector<16x128xf32>
    %329 = math.tanh %328 : vector<16x128xf32>
    %cst_111 = arith.constant 1.000000e+00 : f32
    %330 = vector.broadcast %cst_111 : f32 to vector<16x128xf32>
    %331 = arith.addf %330, %329 : vector<16x128xf32>
    %332 = arith.mulf %321, %331 : vector<16x128xf32>
    %333 = arith.truncf %332 : vector<16x128xf32> to vector<16x128xbf16>
    %c1_112 = arith.constant 1 : index
    %c0_113 = arith.constant 0 : index
    %c0_114 = arith.constant 0 : index
    %334 = vector.load %arg4[%c1_112, %c0_113, %c0_114] : memref<2x128x32xbf16, #tpu.memory_space<vmem>>, vector<1x128x32xbf16>
    %335 = vector.shape_cast %334 : vector<1x128x32xbf16> to vector<128x32xbf16>
    %cst_115 = arith.constant dense<0.000000e+00> : vector<16x32xf32>
    %336 = tpu.matmul %333, %335, %cst_115 {dimension_numbers = #tpu.dot_dimension_numbers<[1], [0], [0], [1], [0, 0, 1, 1], [], []>} : vector<16x128xbf16>, vector<128x32xbf16>, vector<16x32xf32> -> vector<16x32xf32>
    %c15 = arith.constant 15 : index
    %c0_116 = arith.constant 0 : index
    %337 = vector.load %arg6[%c15, %c0_116] : memref<18x128xf32, #tpu.memory_space<vmem>>, vector<1x32xf32>
    %338 = vector.broadcast %337 : vector<1x32xf32> to vector<16x32xf32>
    %339 = arith.addf %336, %338 : vector<16x32xf32>
    %340 = arith.addf %288, %339 : vector<16x32xf32>
    %c16 = arith.constant 16 : index
    %c0_117 = arith.constant 0 : index
    %341 = vector.load %arg6[%c16, %c0_117] : memref<18x128xf32, #tpu.memory_space<vmem>>, vector<1x32xf32>
    %c17 = arith.constant 17 : index
    %c0_118 = arith.constant 0 : index
    %342 = vector.load %arg6[%c17, %c0_118] : memref<18x128xf32, #tpu.memory_space<vmem>>, vector<1x32xf32>
    %cst_119 = arith.constant dense<0.000000e+00> : vector<16xf32>
    %343 = vector.multi_reduction <add>, %340, %cst_119 [1] : vector<16x32xf32> to vector<16xf32>
    %344 = vector.shape_cast %343 : vector<16xf32> to vector<16x1xf32>
    %cst_120 = arith.constant 3.200000e+01 : f32
    %345 = vector.broadcast %cst_120 : f32 to vector<16x1xf32>
    %346 = arith.divf %344, %345 : vector<16x1xf32>
    %347 = vector.broadcast %346 : vector<16x1xf32> to vector<16x32xf32>
    %348 = arith.subf %340, %347 : vector<16x32xf32>
    %349 = arith.mulf %348, %348 : vector<16x32xf32>
    %cst_121 = arith.constant dense<0.000000e+00> : vector<16xf32>
    %350 = vector.multi_reduction <add>, %349, %cst_121 [1] : vector<16x32xf32> to vector<16xf32>
    %351 = vector.shape_cast %350 : vector<16xf32> to vector<16x1xf32>
    %cst_122 = arith.constant 3.200000e+01 : f32
    %352 = vector.broadcast %cst_122 : f32 to vector<16x1xf32>
    %353 = arith.divf %351, %352 : vector<16x1xf32>
    %354 = vector.broadcast %346 : vector<16x1xf32> to vector<16x32xf32>
    %355 = arith.subf %340, %354 : vector<16x32xf32>
    %cst_123 = arith.constant 9.99999974E-6 : f32
    %356 = vector.broadcast %cst_123 : f32 to vector<16x1xf32>
    %357 = arith.addf %353, %356 : vector<16x1xf32>
    %358 = math.rsqrt %357 : vector<16x1xf32>
    %359 = vector.broadcast %358 : vector<16x1xf32> to vector<16x32xf32>
    %360 = arith.mulf %355, %359 : vector<16x32xf32>
    %361 = vector.broadcast %341 : vector<1x32xf32> to vector<16x32xf32>
    %362 = arith.mulf %360, %361 : vector<16x32xf32>
    %363 = vector.broadcast %342 : vector<1x32xf32> to vector<16x32xf32>
    %364 = arith.addf %362, %363 : vector<16x32xf32>
    %365 = arith.truncf %364 : vector<16x32xf32> to vector<16x32xbf16>
    %c0_124 = arith.constant 0 : index
    %c0_125 = arith.constant 0 : index
    %366 = vector.load %arg5[%c0_124, %c0_125] : memref<32x128xbf16, #tpu.memory_space<vmem>>, vector<32x128xbf16>
    %cst_126 = arith.constant dense<0.000000e+00> : vector<16x128xf32>
    %367 = tpu.matmul %365, %366, %cst_126 {dimension_numbers = #tpu.dot_dimension_numbers<[1], [0], [0], [1], [0, 0, 1, 1], [], []>} : vector<16x32xbf16>, vector<32x128xbf16>, vector<16x128xf32> -> vector<16x128xf32>
    %c0_127 = arith.constant 0 : index
    %c0_128 = arith.constant 0 : index
    %368 = vector.load %arg7[%c0_127, %c0_128] : memref<16x128xf32, #tpu.memory_space<vmem>>, vector<16x128xf32>
    tpu.vector_store %arg7[%c0_127, %c0_128], %367 {strides = array<i32>} : memref<16x128xf32, #tpu.memory_space<vmem>>, vector<16x128xf32>,
    return
  }
}

</mosaic_0001>

<llo_original>
// kernel: gpt2_forward.1
$region0: #{gpt2_forward.1}
  #allocation0 [shape = 'u32[]', space=smem, size = 0x4, offset = 0x4, fixed_abs, tag = 'smem constant byte address 0x4 - core index']
  #allocation1 [shape = 'u32[72,128]{1,0:T(1,128)}', space=vmem, size = 0x9000, scoped, tag = 'internal scratch']
  %s0 = inlined_call_operand.vmem [shape: f32[16,32], index: 0, kind: input, shape index: {}]
  %s1 = inlined_call_operand.vmem [shape: bf16[2,32,96], index: 1, kind: input, shape index: {}]
  %s2 = inlined_call_operand.vmem [shape: bf16[2,32,32], index: 2, kind: input, shape index: {}]
  %s3 = inlined_call_operand.vmem [shape: bf16[2,32,128], index: 3, kind: input, shape index: {}]
  %s4 = inlined_call_operand.vmem [shape: bf16[2,128,32], index: 4, kind: input, shape index: {}]
  %s5 = inlined_call_operand.vmem [shape: bf16[32,128], index: 5, kind: input, shape index: {}]
  %s6 = inlined_call_operand.vmem [shape: f32[18,128], index: 6, kind: input, shape index: {}]
  %s7 = inlined_call_operand.hbm [shape: f32[16,128], index: 7, kind: output, shape index: {}]
  %s8 = sld [smem:[#allocation0]]
  $region38: #{gpt2_forward.1} parent=0
    _
  %s10 = ssub.s32 1, %s8
  %s11 = scalar_select 0, %s10, %s8
  $region1: #{gpt2_forward.1} parent=0
    #allocation2 [shape = 'u8[8192]{0}', space=vmem, size = 0x2000, scoped, tag = 'output window, operand 0, single buffered']
    #allocation3 [shape = 's32[1]{0}', space=sflag, size = 0x4, scoped, tag = 'scoped memory for gpt2_forward.1']
    %12 = vsyncpa [#allocation3], 0
    // Predicated region
    $region2: #{gpt2_forward.1} parent=1 // pred_check
      _
    $region3: #{gpt2_forward.1} parent=1 // pred_check_branch
      %14 = sbr.rel (0) target = $region5
    $region4: #{gpt2_forward.1} parent=1 // pred_region
      _
    $region5: #{gpt2_forward.1} parent=1 // pred_fallthru
      _
    // Predicated region
    $region6: #{gpt2_forward.1} parent=1 // pred_check
      _
    $region7: #{gpt2_forward.1} parent=1 // pred_check_branch
      %16 = sbr.rel (0) target = $region9
    $region8: #{gpt2_forward.1} parent=1 // pred_region
      _
    $region9: #{gpt2_forward.1} parent=1 // pred_fallthru
      _
    // Predicated region
    $region10: #{gpt2_forward.1} parent=1 // pred_check
      _
    $region11: #{gpt2_forward.1} parent=1 // pred_check_branch
      %18 = sbr.rel (0) target = $region13
    $region12: #{gpt2_forward.1} parent=1 // pred_region
      _
    $region13: #{gpt2_forward.1} parent=1 // pred_fallthru
      _
    // Predicated region
    $region14: #{gpt2_forward.1} parent=1 // pred_check
      _
    $region15: #{gpt2_forward.1} parent=1 // pred_check_branch
      %20 = sbr.rel (0) target = $region17
    $region16: #{gpt2_forward.1} parent=1 // pred_region
      _
    $region17: #{gpt2_forward.1} parent=1 // pred_fallthru
      _
    // Predicated region
    $region18: #{gpt2_forward.1} parent=1 // pred_check
      _
    $region19: #{gpt2_forward.1} parent=1 // pred_check_branch
      %22 = sbr.rel (0) target = $region21
    $region20: #{gpt2_forward.1} parent=1 // pred_region
      _
    $region21: #{gpt2_forward.1} parent=1 // pred_fallthru
      _
    // Predicated region
    $region22: #{gpt2_forward.1} parent=1 // pred_check
      _
    $region23: #{gpt2_forward.1} parent=1 // pred_check_branch
      %24 = sbr.rel (0) target = $region25
    $region24: #{gpt2_forward.1} parent=1 // pred_region
      _
    $region25: #{gpt2_forward.1} parent=1 // pred_fallthru
      _
    // Predicated region
    $region26: #{gpt2_forward.1} parent=1 // pred_check
      _
    $region27: #{gpt2_forward.1} parent=1 // pred_check_branch
      %26 = sbr.rel (0) target = $region29
    $region28: #{gpt2_forward.1} parent=1 // pred_region
      _
    $region29: #{gpt2_forward.1} parent=1 // pred_fallthru
      _
    %v28 = vld [vmem:[%s0] sm:$0xff]
    %v29 = vld [vmem:[%s0 + $0x8] sm:$0xff]
    %v30 = vlaneseq
    %v31 = vshrl.u32 %v30, 7
    %v32 = vlaneseq
    %v33 = vand.u32 %v32, 127
    %vm34 = vcmp.le.s32.totalorder %v33, %v31
    %v35 = vsel %vm34, 1, 0
    %vm36 = vcmp.eq.s32.totalorder %v35, 1
    %v37 = vld [vmem:[%s6] sm:$0x1]
    %v38 = vld [vmem:[%s6 + $0x1] sm:$0x1]
    %vm39 = vcmask 261120
    %v40 = vsel %vm39, %v28, 0.0
    %41 = vadd.xlane.f32.xlu0 %v40
    %v42 = vpop.xlane.xlu0 %41
    %v43 = vsel %vm39, %v29, 0.0
    %44 = vadd.xlane.f32.xlu0 %v43
    %v45 = vpop.xlane.xlu0 %44
    %v46 = vrcp.pop 32.0
    %v47 = vmul.f32 32.0, %v46
    %v48 = vsub.f32 1.0, %v47
    %v49 = vmul.f32 %v46, %v48
    %v50 = vadd.f32 %v46, %v49
    %vm51 = vweird.f32 %v46
    %v52 = vsel %vm51, %v46, %v50
    %v53 = vmul.f32 %v42, %v52
    %v54 = vmul.f32 %v45, %v52
    %v55 = vsub.f32 %v28, %v53
    %v56 = vsub.f32 %v29, %v54
    %v57 = vmul.f32 %v55, %v55
    %v58 = vmul.f32 %v56, %v56
    %v59 = vsel %vm39, %v57, 0.0
    %60 = vadd.xlane.f32.xlu0 %v59
    %v61 = vpop.xlane.xlu0 %60
    %v62 = vsel %vm39, %v58, 0.0
    %63 = vadd.xlane.f32.xlu0 %v62
    %v64 = vpop.xlane.xlu0 %63
    %v65 = vmul.f32 %v61, %v52
    %v66 = vmul.f32 %v64, %v52
    %v67 = vadd.f32 %v65, 1e-05
    %v68 = vadd.f32 %v66, 1e-05
    %v69 = vrsqrt.pop %v67
    %v70 = vmul.f32 %v69, %v67
    %v71 = vmul.f32 %v70, %v69
    %v72 = vmul.f32 0.5, %v71
    %v73 = vsub.f32 1.5, %v72
    %v74 = vmul.f32 %v69, %v73
    %vm75 = vweird.f32 %v67
    %vm76 = vweird.f32 %v69
    %vm77 = vmor %vm75, %vm76
    %v78 = vsel %vm77, %v69, %v74
    %v79 = vrsqrt.pop %v68
    %v80 = vmul.f32 %v79, %v68
    %v81 = vmul.f32 %v80, %v79
    %v82 = vmul.f32 0.5, %v81
    %v83 = vsub.f32 1.5, %v82
    %v84 = vmul.f32 %v79, %v83
    %vm85 = vweird.f32 %v68
    %vm86 = vweird.f32 %v79
    %vm87 = vmor %vm85, %vm86
    %v88 = vsel %vm87, %v79, %v84
    %v89 = vmul.f32 %v55, %v78
    %v90 = vmul.f32 %v56, %v88
    %v91 = vperm.slane %v37, 0
    %v92 = vmul.f32 %v89, %v91
    %v93 = vmul.f32 %v90, %v91
    %v94 = vperm.slane %v38, 0
    %v95 = vadd.f32 %v92, %v94
    %v96 = vadd.f32 %v93, %v94
    %v97 = vpack.c.bf16 %v96, %v95
    %v98 = vld [vmem:[%s1] sm:$0xf]
    %v99 = vld [vmem:[%s1 + $0x4] sm:$0xf]
    %v100 = vld [vmem:[%s1 + $0x8] sm:$0xf]
    %v101 = vld [vmem:[%s1 + $0xc] sm:$0xf]
    %v102 = vld [vmem:[%s6 + $0x2] sm:$0x1]
    %v103 = vperm.slane %v102, 0
    %v108 = vunpack.c.l.b16 %v98
    %v109 = vunpack.c.l.b16 %v99
    %v110 = vunpack.c.l.b16 %v100
    %v111 = vunpack.c.l.b16 %v101
    %v112 = vpack.c.b16 %v109, %v108
    %v113 = vpack.c.b16 %v111, %v110
    %v117 = vsel %vm39, %v97, 0
    %119 = vmatpush.bf16.msra.mxu0 0
    %120 = vmatpush.bf16.msra.mxu0 0
    %121 = vmatpush.bf16.msra.mxu0 0
    %122 = vmatpush.bf16.msra.mxu0 0
    %123 = vmatpush.bf16.msra.mxu0 0
    %124 = vmatpush.bf16.msra.mxu0 0
    %125 = vmatpush.bf16.msra.mxu0 %v113
    %126 = vmatpush.bf16.msra.mxu0 %v112
    %127 = vmatmul.bf16.gmra.mxu0 %v117
    %v128 = vpop.f32.mrf.mxu0
    %v129 = vadd.f32 %v103, %v128
    %v130 = vpop.f32.mrf.mxu0
    %v131 = vadd.f32 %v103, %v130
    %132 = vdwg.mxu0
    %v133 = vpack.c.bf16 %v129, %v129
    %v134 = vpack.c.bf16 %v131, %v131
    %v136 = vunpack.c.l.b16 %v133
    %v137 = vpack.c.b16 %v136, %v136
    %138 = vrot.lane.b32.xlu0 %v137, 96
    %v139 = vpop.permute.xlu0 %138
    %vm140 = vcmask 64512
    %v142 = vsel %vm140, %v133, 0
    %v145 = vsel %vm140, %v139, 0
    %147 = vmatpush.bf16.xpose.msra.mxu0 0
    %148 = vmatpush.bf16.xpose.msra.mxu0 0
    %149 = vmatpush.bf16.xpose.msra.mxu0 0
    %150 = vmatpush.bf16.xpose.msra.mxu0 0
    %151 = vmatpush.bf16.xpose.msra.mxu0 0
    %152 = vmatpush.bf16.xpose.msra.mxu0 0
    %153 = vmatpush.bf16.xpose.msra.mxu0 0
    %154 = vmatpush.bf16.xpose.msra.mxu0 %v145
    %155 = vmatmul.bf16.gmra.mxu0 %v142
    %v156 = vpop.f32.mrf.mxu0
    %v157 = vadd.f32 0.0, %v156
    %v158 = vpop.f32.mrf.mxu0
    %159 = vdwg.mxu0
    %v161 = vunpack.c.l.b16 %v134
    %v162 = vpack.c.b16 %v161, %v161
    %163 = vrot.lane.b32.xlu0 %v162, 96
    %v164 = vpop.permute.xlu0 %163
    %v166 = vsel %vm140, %v134, 0
    %v169 = vsel %vm140, %v164, 0
    %171 = vmatpush.bf16.xpose.msra.mxu0 0
    %172 = vmatpush.bf16.xpose.msra.mxu0 0
    %173 = vmatpush.bf16.xpose.msra.mxu0 0
    %174 = vmatpush.bf16.xpose.msra.mxu0 0
    %175 = vmatpush.bf16.xpose.msra.mxu0 0
    %176 = vmatpush.bf16.xpose.msra.mxu0 0
    %177 = vmatpush.bf16.xpose.msra.mxu0 0
    %178 = vmatpush.bf16.xpose.msra.mxu0 %v169
    %179 = vmatmul.bf16.gmra.mxu0 %v166
    %v180 = vpop.f32.mrf.mxu0
    %v181 = vadd.f32 0.0, %v180
    %v182 = vpop.f32.mrf.mxu0
    %183 = vdwg.mxu0
    %v184 = vsel %vm36, %v157, -1e+30
    %v185 = vsel %vm36, %v181, -1e+30
    %v186 = vsel %vm140, %v184, -inf
    %187 = vmax.xlane.f32.xlu0 %v186
    %v188 = vpop.xlane.xlu0 %187
    %v189 = vsel %vm140, %v185, -inf
    %190 = vmax.xlane.f32.xlu0 %v189
    %v191 = vpop.xlane.xlu0 %190
    %v192 = vsub.f32 %v184, %v188
    %v193 = vsub.f32 %v185, %v191
    %v194 = vmul.f32 %v192, 1.442695
    %v195 = vpow.pop %v194
    %v196 = vmul.f32 %v193, 1.442695
    %v197 = vpow.pop %v196
    %v198 = vsel %vm140, %v195, 0.0
    %199 = vadd.xlane.f32.xlu0 %v198
    %v200 = vpop.xlane.xlu0 %199
    %v201 = vsel %vm140, %v197, 0.0
    %202 = vadd.xlane.f32.xlu0 %v201
    %v203 = vpop.xlane.xlu0 %202
    %v204 = vrcp.pop %v200
    %v205 = vrcp.pop %v203
    %v206 = vmul.f32 %v195, %v204
    %v207 = vmul.f32 %v197, %v205
    %v208 = vpack.c.bf16 %v206, %v206
    %v209 = vpack.c.bf16 %v207, %v207
    %210 = vrot.lane.b32.xlu0 %v137, 64
    %v211 = vpop.permute.xlu0 %210
    %v213 = vsel %vm140, %v208, 0
    %vm215 = vcmask 1043456
    %v217 = vsel %vm215, %v211, 0
    %219 = vmatpush.bf16.msra.mxu0 0
    %220 = vmatpush.bf16.msra.mxu0 0
    %221 = vmatpush.bf16.msra.mxu0 0
    %222 = vmatpush.bf16.msra.mxu0 0
    %223 = vmatpush.bf16.msra.mxu0 0
    %224 = vmatpush.bf16.msra.mxu0 0
    %225 = vmatpush.bf16.msra.mxu0 0
    %226 = vmatpush.bf16.msra.mxu0 %v217
    %227 = vmatmul.bf16.gmra.mxu0 %v213
    %v228 = vpop.f32.mrf.mxu0
    %v229 = vadd.f32 0.0, %v228
    %v230 = vpop.f32.mrf.mxu0
    %231 = vdwg.mxu0
    %232 = vrot.lane.b32.xlu0 %v162, 64
    %v233 = vpop.permute.xlu0 %232
    %v235 = vsel %vm140, %v209, 0
    %v238 = vsel %vm215, %v233, 0
    %240 = vmatpush.bf16.msra.mxu0 0
    %241 = vmatpush.bf16.msra.mxu0 0
    %242 = vmatpush.bf16.msra.mxu0 0
    %243 = vmatpush.bf16.msra.mxu0 0
    %244 = vmatpush.bf16.msra.mxu0 0
    %245 = vmatpush.bf16.msra.mxu0 0
    %246 = vmatpush.bf16.msra.mxu0 0
    %247 = vmatpush.bf16.msra.mxu0 %v238
    %248 = vmatmul.bf16.gmra.mxu0 %v235
    %v249 = vpop.f32.mrf.mxu0
    %v250 = vadd.f32 0.0, %v249
    %v251 = vpop.f32.mrf.mxu0
    %252 = vdwg.mxu0
    %253 = vrot.lane.b32.xlu0 %v137, 120
    %v254 = vpop.permute.xlu0 %253
    %255 = vrot.lane.b32.xlu0 %v137, 88
    %v256 = vpop.permute.xlu0 %255
    %v258 = vsel %vm140, %v254, 0
    %v261 = vsel %vm140, %v256, 0
    %263 = vmatpush.bf16.xpose.msra.mxu0 0
    %264 = vmatpush.bf16.xpose.msra.mxu0 0
    %265 = vmatpush.bf16.xpose.msra.mxu0 0
    %266 = vmatpush.bf16.xpose.msra.mxu0 0
    %267 = vmatpush.bf16.xpose.msra.mxu0 0
    %268 = vmatpush.bf16.xpose.msra.mxu0 0
    %269 = vmatpush.bf16.xpose.msra.mxu0 0
    %270 = vmatpush.bf16.xpose.msra.mxu0 %v261
    %271 = vmatmul.bf16.gmra.mxu0 %v258
    %v272 = vpop.f32.mrf.mxu0
    %v273 = vadd.f32 0.0, %v272
    %v274 = vpop.f32.mrf.mxu0
    %275 = vdwg.mxu0
    %276 = vrot.lane.b32.xlu0 %v162, 120
    %v277 = vpop.permute.xlu0 %276
    %278 = vrot.lane.b32.xlu0 %v162, 88
    %v279 = vpop.permute.xlu0 %278
    %v281 = vsel %vm140, %v277, 0
    %v284 = vsel %vm140, %v279, 0
    %286 = vmatpush.bf16.xpose.msra.mxu0 0
    %287 = vmatpush.bf16.xpose.msra.mxu0 0
    %288 = vmatpush.bf16.xpose.msra.mxu0 0
    %289 = vmatpush.bf16.xpose.msra.mxu0 0
    %290 = vmatpush.bf16.xpose.msra.mxu0 0
    %291 = vmatpush.bf16.xpose.msra.mxu0 0
    %292 = vmatpush.bf16.xpose.msra.mxu0 0
    %293 = vmatpush.bf16.xpose.msra.mxu0 %v284
    %294 = vmatmul.bf16.gmra.mxu0 %v281
    %v295 = vpop.f32.mrf.mxu0
    %v296 = vadd.f32 0.0, %v295
    %v297 = vpop.f32.mrf.mxu0
    %298 = vdwg.mxu0
    %v299 = vsel %vm36, %v273, -1e+30
    %v300 = vsel %vm36, %v296, -1e+30
    %v301 = vsel %vm140, %v299, -inf
    %302 = vmax.xlane.f32.xlu0 %v301
    %v303 = vpop.xlane.xlu0 %302
    %v304 = vsel %vm140, %v300, -inf
    %305 = vmax.xlane.f32.xlu0 %v304
    %v306 = vpop.xlane.xlu0 %305
    %v307 = vsub.f32 %v299, %v303
    %v308 = vsub.f32 %v300, %v306
    %v309 = vmul.f32 %v307, 1.442695
    %v310 = vpow.pop %v309
    %v311 = vmul.f32 %v308, 1.442695
    %v312 = vpow.pop %v311
    %v313 = vsel %vm140, %v310, 0.0
    %314 = vadd.xlane.f32.xlu0 %v313
    %v315 = vpop.xlane.xlu0 %314
    %v316 = vsel %vm140, %v312, 0.0
    %317 = vadd.xlane.f32.xlu0 %v316
    %v318 = vpop.xlane.xlu0 %317
    %v319 = vrcp.pop %v315
    %v320 = vrcp.pop %v318
    %v321 = vmul.f32 %v310, %v319
    %v322 = vmul.f32 %v312, %v320
    %v323 = vpack.c.bf16 %v321, %v321
    %v324 = vpack.c.bf16 %v322, %v322
    %325 = vrot.lane.b32.xlu0 %v137, 56
    %v326 = vpop.permute.xlu0 %325
    %v328 = vsel %vm140, %v323, 0
    %v331 = vsel %vm215, %v326, 0
    %333 = vmatpush.bf16.msra.mxu0 0
    %334 = vmatpush.bf16.msra.mxu0 0
    %335 = vmatpush.bf16.msra.mxu0 0
    %336 = vmatpush.bf16.msra.mxu0 0
    %337 = vmatpush.bf16.msra.mxu0 0
    %338 = vmatpush.bf16.msra.mxu0 0
    %339 = vmatpush.bf16.msra.mxu0 0
    %340 = vmatpush.bf16.msra.mxu0 %v331
    %341 = vmatmul.bf16.gmra.mxu0 %v328
    %v342 = vpop.f32.mrf.mxu0
    %v343 = vadd.f32 0.0, %v342
    %v344 = vpop.f32.mrf.mxu0
    %345 = vdwg.mxu0
    %346 = vrot.lane.b32.xlu0 %v162, 56
    %v347 = vpop.permute.xlu0 %346
    %v349 = vsel %vm140, %v324, 0
    %v352 = vsel %vm215, %v347, 0
    %354 = vmatpush.bf16.msra.mxu0 0
    %355 = vmatpush.bf16.msra.mxu0 0
    %356 = vmatpush.bf16.msra.mxu0 0
    %357 = vmatpush.bf16.msra.mxu0 0
    %358 = vmatpush.bf16.msra.mxu0 0
    %359 = vmatpush.bf16.msra.mxu0 0
    %360 = vmatpush.bf16.msra.mxu0 0
    %361 = vmatpush.bf16.msra.mxu0 %v352
    %362 = vmatmul.bf16.gmra.mxu0 %v349
    %v363 = vpop.f32.mrf.mxu0
    %v364 = vadd.f32 0.0, %v363
    %v365 = vpop.f32.mrf.mxu0
    %366 = vdwg.mxu0
    %367 = vrot.lane.b32.xlu0 %v137, 112
    %v368 = vpop.permute.xlu0 %367
    %369 = vrot.lane.b32.xlu0 %v137, 80
    %v370 = vpop.permute.xlu0 %369
    %v372 = vsel %vm140, %v368, 0
    %v375 = vsel %vm140, %v370, 0
    %377 = vmatpush.bf16.xpose.msra.mxu0 0
    %378 = vmatpush.bf16.xpose.msra.mxu0 0
    %379 = vmatpush.bf16.xpose.msra.mxu0 0
    %380 = vmatpush.bf16.xpose.msra.mxu0 0
    %381 = vmatpush.bf16.xpose.msra.mxu0 0
    %382 = vmatpush.bf16.xpose.msra.mxu0 0
    %383 = vmatpush.bf16.xpose.msra.mxu0 0
    %384 = vmatpush.bf16.xpose.msra.mxu0 %v375
    %385 = vmatmul.bf16.gmra.mxu0 %v372
    %v386 = vpop.f32.mrf.mxu0
    %v387 = vadd.f32 0.0, %v386
    %v388 = vpop.f32.mrf.mxu0
    %389 = vdwg.mxu0
    %390 = vrot.lane.b32.xlu0 %v162, 112
    %v391 = vpop.permute.xlu0 %390
    %392 = vrot.lane.b32.xlu0 %v162, 80
    %v393 = vpop.permute.xlu0 %392
    %v395 = vsel %vm140, %v391, 0
    %v398 = vsel %vm140, %v393, 0
    %400 = vmatpush.bf16.xpose.msra.mxu0 0
    %401 = vmatpush.bf16.xpose.msra.mxu0 0
    %402 = vmatpush.bf16.xpose.msra.mxu0 0
    %403 = vmatpush.bf16.xpose.msra.mxu0 0
    %404 = vmatpush.bf16.xpose.msra.mxu0 0
    %405 = vmatpush.bf16.xpose.msra.mxu0 0
    %406 = vmatpush.bf16.xpose.msra.mxu0 0
    %407 = vmatpush.bf16.xpose.msra.mxu0 %v398
    %408 = vmatmul.bf16.gmra.mxu0 %v395
    %v409 = vpop.f32.mrf.mxu0
    %v410 = vadd.f32 0.0, %v409
    %v411 = vpop.f32.mrf.mxu0
    %412 = vdwg.mxu0
    %v413 = vsel %vm36, %v387, -1e+30
    %v414 = vsel %vm36, %v410, -1e+30
    %v415 = vsel %vm140, %v413, -inf
    %416 = vmax.xlane.f32.xlu0 %v415
    %v417 = vpop.xlane.xlu0 %416
    %v418 = vsel %vm140, %v414, -inf
    %419 = vmax.xlane.f32.xlu0 %v418
    %v420 = vpop.xlane.xlu0 %419
    %v421 = vsub.f32 %v413, %v417
    %v422 = vsub.f32 %v414, %v420
    %v423 = vmul.f32 %v421, 1.442695
    %v424 = vpow.pop %v423
    %v425 = vmul.f32 %v422, 1.442695
    %v426 = vpow.pop %v425
    %v427 = vsel %vm140, %v424, 0.0
    %428 = vadd.xlane.f32.xlu0 %v427
    %v429 = vpop.xlane.xlu0 %428
    %v430 = vsel %vm140, %v426, 0.0
    %431 = vadd.xlane.f32.xlu0 %v430
    %v432 = vpop.xlane.xlu0 %431
    %v433 = vrcp.pop %v429
    %v434 = vrcp.pop %v432
    %v435 = vmul.f32 %v424, %v433
    %v436 = vmul.f32 %v426, %v434
    %v437 = vpack.c.bf16 %v435, %v435
    %v438 = vpack.c.bf16 %v436, %v436
    %439 = vrot.lane.b32.xlu0 %v137, 48
    %v440 = vpop.permute.xlu0 %439
    %v442 = vsel %vm140, %v437, 0
    %v445 = vsel %vm215, %v440, 0
    %447 = vmatpush.bf16.msra.mxu0 0
    %448 = vmatpush.bf16.msra.mxu0 0
    %449 = vmatpush.bf16.msra.mxu0 0
    %450 = vmatpush.bf16.msra.mxu0 0
    %451 = vmatpush.bf16.msra.mxu0 0
    %452 = vmatpush.bf16.msra.mxu0 0
    %453 = vmatpush.bf16.msra.mxu0 0
    %454 = vmatpush.bf16.msra.mxu0 %v445
    %455 = vmatmul.bf16.gmra.mxu0 %v442
    %v456 = vpop.f32.mrf.mxu0
    %v457 = vadd.f32 0.0, %v456
    %v458 = vpop.f32.mrf.mxu0
    %459 = vdwg.mxu0
    %460 = vrot.lane.b32.xlu0 %v162, 48
    %v461 = vpop.permute.xlu0 %460
    %v463 = vsel %vm140, %v438, 0
    %v466 = vsel %vm215, %v461, 0
    %468 = vmatpush.bf16.msra.mxu0 0
    %469 = vmatpush.bf16.msra.mxu0 0
    %470 = vmatpush.bf16.msra.mxu0 0
    %471 = vmatpush.bf16.msra.mxu0 0
    %472 = vmatpush.bf16.msra.mxu0 0
    %473 = vmatpush.bf16.msra.mxu0 0
    %474 = vmatpush.bf16.msra.mxu0 0
    %475 = vmatpush.bf16.msra.mxu0 %v466
    %476 = vmatmul.bf16.gmra.mxu0 %v463
    %v477 = vpop.f32.mrf.mxu0
    %v478 = vadd.f32 0.0, %v477
    %v479 = vpop.f32.mrf.mxu0
    %480 = vdwg.mxu0
    %481 = vrot.lane.b32.xlu0 %v137, 104
    %v482 = vpop.permute.xlu0 %481
    %483 = vrot.lane.b32.xlu0 %v137, 72
    %v484 = vpop.permute.xlu0 %483
    %v486 = vsel %vm140, %v482, 0
    %v489 = vsel %vm140, %v484, 0
    %491 = vmatpush.bf16.xpose.msra.mxu0 0
    %492 = vmatpush.bf16.xpose.msra.mxu0 0
    %493 = vmatpush.bf16.xpose.msra.mxu0 0
    %494 = vmatpush.bf16.xpose.msra.mxu0 0
    %495 = vmatpush.bf16.xpose.msra.mxu0 0
    %496 = vmatpush.bf16.xpose.msra.mxu0 0
    %497 = vmatpush.bf16.xpose.msra.mxu0 0
    %498 = vmatpush.bf16.xpose.msra.mxu0 %v489
    %499 = vmatmul.bf16.gmra.mxu0 %v486
    %v500 = vpop.f32.mrf.mxu0
    %v501 = vadd.f32 0.0, %v500
    %v502 = vpop.f32.mrf.mxu0
    %503 = vdwg.mxu0
    %504 = vrot.lane.b32.xlu0 %v162, 104
    %v505 = vpop.permute.xlu0 %504
    %506 = vrot.lane.b32.xlu0 %v162, 72
    %v507 = vpop.permute.xlu0 %506
    %v509 = vsel %vm140, %v505, 0
    %v512 = vsel %vm140, %v507, 0
    %514 = vmatpush.bf16.xpose.msra.mxu0 0
    %515 = vmatpush.bf16.xpose.msra.mxu0 0
    %516 = vmatpush.bf16.xpose.msra.mxu0 0
    %517 = vmatpush.bf16.xpose.msra.mxu0 0
    %518 = vmatpush.bf16.xpose.msra.mxu0 0
    %519 = vmatpush.bf16.xpose.msra.mxu0 0
    %520 = vmatpush.bf16.xpose.msra.mxu0 0
    %521 = vmatpush.bf16.xpose.msra.mxu0 %v512
    %522 = vmatmul.bf16.gmra.mxu0 %v509
    %v523 = vpop.f32.mrf.mxu0
    %v524 = vadd.f32 0.0, %v523
    %v525 = vpop.f32.mrf.mxu0
    %526 = vdwg.mxu0
    %v527 = vsel %vm36, %v501, -1e+30
    %v528 = vsel %vm36, %v524, -1e+30
    %v529 = vsel %vm140, %v527, -inf
    %530 = vmax.xlane.f32.xlu0 %v529
    %v531 = vpop.xlane.xlu0 %530
    %v532 = vsel %vm140, %v528, -inf
    %533 = vmax.xlane.f32.xlu0 %v532
    %v534 = vpop.xlane.xlu0 %533
    %v535 = vsub.f32 %v527, %v531
    %v536 = vsub.f32 %v528, %v534
    %v537 = vmul.f32 %v535, 1.442695
    %v538 = vpow.pop %v537
    %v539 = vmul.f32 %v536, 1.442695
    %v540 = vpow.pop %v539
    %v541 = vsel %vm140, %v538, 0.0
    %542 = vadd.xlane.f32.xlu0 %v541
    %v543 = vpop.xlane.xlu0 %542
    %v544 = vsel %vm140, %v540, 0.0
    %545 = vadd.xlane.f32.xlu0 %v544
    %v546 = vpop.xlane.xlu0 %545
    %v547 = vrcp.pop %v543
    %v548 = vrcp.pop %v546
    %v549 = vmul.f32 %v538, %v547
    %v550 = vmul.f32 %v540, %v548
    %v551 = vpack.c.bf16 %v549, %v549
    %v552 = vpack.c.bf16 %v550, %v550
    %553 = vrot.lane.b32.xlu0 %v137, 40
    %v554 = vpop.permute.xlu0 %553
    %v556 = vsel %vm140, %v551, 0
    %v559 = vsel %vm215, %v554, 0
    %561 = vmatpush.bf16.msra.mxu0 0
    %562 = vmatpush.bf16.msra.mxu0 0
    %563 = vmatpush.bf16.msra.mxu0 0
    %564 = vmatpush.bf16.msra.mxu0 0
    %565 = vmatpush.bf16.msra.mxu0 0
    %566 = vmatpush.bf16.msra.mxu0 0
    %567 = vmatpush.bf16.msra.mxu0 0
    %568 = vmatpush.bf16.msra.mxu0 %v559
    %569 = vmatmul.bf16.gmra.mxu0 %v556
    %v570 = vpop.f32.mrf.mxu0
    %v571 = vadd.f32 0.0, %v570
    %v572 = vpop.f32.mrf.mxu0
    %573 = vdwg.mxu0
    %574 = vrot.lane.b32.xlu0 %v162, 40
    %v575 = vpop.permute.xlu0 %574
    %v577 = vsel %vm140, %v552, 0
    %v580 = vsel %vm215, %v575, 0
    %582 = vmatpush.bf16.msra.mxu0 0
    %583 = vmatpush.bf16.msra.mxu0 0
    %584 = vmatpush.bf16.msra.mxu0 0
    %585 = vmatpush.bf16.msra.mxu0 0
    %586 = vmatpush.bf16.msra.mxu0 0
    %587 = vmatpush.bf16.msra.mxu0 0
    %588 = vmatpush.bf16.msra.mxu0 0
    %589 = vmatpush.bf16.msra.mxu0 %v580
    %590 = vmatmul.bf16.gmra.mxu0 %v577
    %v591 = vpop.f32.mrf.mxu0
    %v592 = vadd.f32 0.0, %v591
    %v593 = vpop.f32.mrf.mxu0
    %594 = vdwg.mxu0
    %597 = vrot.lane.b32.xlu0 %v343, 8
    %v598 = vpop.permute.xlu0 %597
    %599 = vrot.lane.b32.xlu0 %v364, 8
    %v600 = vpop.permute.xlu0 %599
    %605 = vrot.lane.b32.xlu0 %v457, 16
    %v606 = vpop.permute.xlu0 %605
    %607 = vrot.lane.b32.xlu0 %v478, 16
    %v608 = vpop.permute.xlu0 %607
    %613 = vrot.lane.b32.xlu0 %v571, 24
    %v614 = vpop.permute.xlu0 %613
    %615 = vrot.lane.b32.xlu0 %v592, 24
    %v616 = vpop.permute.xlu0 %615
    %v619 = vsel %vm140, %v229, %v598
    %v620 = vsel %vm140, %v250, %v600
    %vm621 = vcmask 130048
    %v622 = vsel %vm621, %v619, %v606
    %v623 = vsel %vm621, %v620, %v608
    %vm624 = vcmask 195584
    %v625 = vsel %vm624, %v622, %v614
    %v626 = vsel %vm624, %v623, %v616
    %v627 = vpack.c.bf16 %v626, %v625
    %v628 = vld [vmem:[%s2] sm:$0xf]
    %v629 = vld [vmem:[%s2 + $0x4] sm:$0xf]
    %v630 = vld [vmem:[%s2 + $0x8] sm:$0xf]
    %v631 = vld [vmem:[%s2 + $0xc] sm:$0xf]
    %v636 = vunpack.c.l.b16 %v628
    %v637 = vunpack.c.l.b16 %v629
    %v638 = vunpack.c.l.b16 %v630
    %v639 = vunpack.c.l.b16 %v631
    %v640 = vpack.c.b16 %v637, %v636
    %v641 = vpack.c.b16 %v639, %v638
    %v645 = vsel %vm39, %v627, 0
    %647 = vmatpush.bf16.msra.mxu0 0
    %648 = vmatpush.bf16.msra.mxu0 0
    %649 = vmatpush.bf16.msra.mxu0 0
    %650 = vmatpush.bf16.msra.mxu0 0
    %651 = vmatpush.bf16.msra.mxu0 0
    %652 = vmatpush.bf16.msra.mxu0 0
    %653 = vmatpush.bf16.msra.mxu0 %v641
    %654 = vmatpush.bf16.msra.mxu0 %v640
    %655 = vmatmul.bf16.gmra.mxu0 %v645
    %v656 = vpop.f32.mrf.mxu0
    %v657 = vadd.f32 0.0, %v656
    %v658 = vpop.f32.mrf.mxu0
    %v659 = vadd.f32 0.0, %v658
    %660 = vdwg.mxu0
    %v661 = vadd.f32 %v28, %v657
    %v662 = vadd.f32 %v29, %v659
    %v663 = vld [vmem:[%s6 + $0x3] sm:$0x1]
    %v664 = vperm.slane %v663, 0
    %v665 = vadd.f32 %v661, %v664
    %v666 = vadd.f32 %v662, %v664
    %v667 = vld [vmem:[%s6 + $0x4] sm:$0x1]
    %v668 = vld [vmem:[%s6 + $0x5] sm:$0x1]
    %v669 = vsel %vm39, %v665, 0.0
    %670 = vadd.xlane.f32.xlu0 %v669
    %v671 = vpop.xlane.xlu0 %670
    %v672 = vsel %vm39, %v666, 0.0
    %673 = vadd.xlane.f32.xlu0 %v672
    %v674 = vpop.xlane.xlu0 %673
    %v675 = vmul.f32 %v671, %v52
    %v676 = vmul.f32 %v674, %v52
    %v677 = vsub.f32 %v665, %v675
    %v678 = vsub.f32 %v666, %v676
    %v679 = vmul.f32 %v677, %v677
    %v680 = vmul.f32 %v678, %v678
    %v681 = vsel %vm39, %v679, 0.0
    %682 = vadd.xlane.f32.xlu0 %v681
    %v683 = vpop.xlane.xlu0 %682
    %v684 = vsel %vm39, %v680, 0.0
    %685 = vadd.xlane.f32.xlu0 %v684
    %v686 = vpop.xlane.xlu0 %685
    %v687 = vmul.f32 %v683, %v52
    %v688 = vmul.f32 %v686, %v52
    %v689 = vadd.f32 %v687, 1e-05
    %v690 = vadd.f32 %v688, 1e-05
    %v691 = vrsqrt.pop %v689
    %v692 = vmul.f32 %v691, %v689
    %v693 = vmul.f32 %v692, %v691
    %v694 = vmul.f32 0.5, %v693
    %v695 = vsub.f32 1.5, %v694
    %v696 = vmul.f32 %v691, %v695
    %vm697 = vweird.f32 %v689
    %vm698 = vweird.f32 %v691
    %vm699 = vmor %vm697, %vm698
    %v700 = vsel %vm699, %v691, %v696
    %v701 = vrsqrt.pop %v690
    %v702 = vmul.f32 %v701, %v690
    %v703 = vmul.f32 %v702, %v701
    %v704 = vmul.f32 0.5, %v703
    %v705 = vsub.f32 1.5, %v704
    %v706 = vmul.f32 %v701, %v705
    %vm707 = vweird.f32 %v690
    %vm708 = vweird.f32 %v701
    %vm709 = vmor %vm707, %vm708
    %v710 = vsel %vm709, %v701, %v706
    %v711 = vmul.f32 %v677, %v700
    %v712 = vmul.f32 %v678, %v710
    %v713 = vperm.slane %v667, 0
    %v714 = vmul.f32 %v711, %v713
    %v715 = vmul.f32 %v712, %v713
    %v716 = vperm.slane %v668, 0
    %v717 = vadd.f32 %v714, %v716
    %v718 = vadd.f32 %v715, %v716
    %v719 = vpack.c.bf16 %v718, %v717
    %v720 = vld [vmem:[%s3] sm:$0xf]
    %v721 = vld [vmem:[%s3 + $0x4] sm:$0xf]
    %v722 = vld [vmem:[%s3 + $0x8] sm:$0xf]
    %v723 = vld [vmem:[%s3 + $0xc] sm:$0xf]
    %v724 = vld [vmem:[%s6 + $0x6] sm:$0x1]
    %v725 = vperm.slane %v724, 0
    %v730 = vunpack.c.l.b16 %v720
    %v731 = vunpack.c.l.b16 %v721
    %v732 = vunpack.c.l.b16 %v722
    %v733 = vunpack.c.l.b16 %v723
    %v734 = vpack.c.b16 %v731, %v730
    %v735 = vpack.c.b16 %v733, %v732
    %v739 = vsel %vm39, %v719, 0
    %741 = vmatpush.bf16.msra.mxu0 0
    %742 = vmatpush.bf16.msra.mxu0 0
    %743 = vmatpush.bf16.msra.mxu0 0
    %744 = vmatpush.bf16.msra.mxu0 0
    %745 = vmatpush.bf16.msra.mxu0 0
    %746 = vmatpush.bf16.msra.mxu0 0
    %747 = vmatpush.bf16.msra.mxu0 %v735
    %748 = vmatpush.bf16.msra.mxu0 %v734
    %749 = vmatmul.bf16.gmra.mxu0 %v739
    %v750 = vpop.f32.mrf.mxu0
    %v751 = vadd.f32 %v725, %v750
    %v752 = vpop.f32.mrf.mxu0
    %v753 = vadd.f32 %v725, %v752
    %754 = vdwg.mxu0
    %v755 = vmul.f32 %v751, 0.5
    %v756 = vmul.f32 %v753, 0.5
    %v757 = vmul.f32 %v751, %v751
    %v758 = vmul.f32 %v753, %v753
    %v759 = vmul.f32 %v751, %v757
    %v760 = vmul.f32 %v753, %v758
    %v761 = vmul.f32 %v759, 0.044715
    %v762 = vmul.f32 %v760, 0.044715
    %v763 = vadd.f32 %v751, %v761
    %v764 = vadd.f32 %v753, %v762
    %v765 = vmul.f32 %v763, 0.7978846
    %v766 = vmul.f32 %v764, 0.7978846
    %v767 = vtanh.pop %v765
    %v768 = vtanh.pop %v766
    %v769 = vadd.f32 %v767, 1.0
    %v770 = vadd.f32 %v768, 1.0
    %v771 = vmul.f32 %v755, %v769
    %v772 = vmul.f32 %v756, %v770
    %v773 = vpack.c.bf16 %v772, %v771
    %v774 = vld [vmem:[%s4] sm:$0xf]
    %v775 = vld [vmem:[%s4 + $0x4] sm:$0xf]
    %v776 = vld [vmem:[%s4 + $0x8] sm:$0xf]
    %v777 = vld [vmem:[%s4 + $0xc] sm:$0xf]
    %v778 = vld [vmem:[%s4 + $0x10] sm:$0xf]
    %v779 = vld [vmem:[%s4 + $0x14] sm:$0xf]
    %v780 = vld [vmem:[%s4 + $0x18] sm:$0xf]
    %v781 = vld [vmem:[%s4 + $0x1c] sm:$0xf]
    %v782 = vld [vmem:[%s4 + $0x20] sm:$0xf]
    %v783 = vld [vmem:[%s4 + $0x24] sm:$0xf]
    %v784 = vld [vmem:[%s4 + $0x28] sm:$0xf]
    %v785 = vld [vmem:[%s4 + $0x2c] sm:$0xf]
    %v786 = vld [vmem:[%s4 + $0x30] sm:$0xf]
    %v787 = vld [vmem:[%s4 + $0x34] sm:$0xf]
    %v788 = vld [vmem:[%s4 + $0x38] sm:$0xf]
    %v789 = vld [vmem:[%s4 + $0x3c] sm:$0xf]
    %v790 = vld [vmem:[%s6 + $0x7] sm:$0x1]
    %v791 = vperm.slane %v790, 0
    %v808 = vunpack.c.l.b16 %v774
    %v809 = vunpack.c.l.b16 %v775
    %v810 = vunpack.c.l.b16 %v776
    %v811 = vunpack.c.l.b16 %v777
    %v812 = vunpack.c.l.b16 %v778
    %v813 = vunpack.c.l.b16 %v779
    %v814 = vunpack.c.l.b16 %v780
    %v815 = vunpack.c.l.b16 %v781
    %v816 = vunpack.c.l.b16 %v782
    %v817 = vunpack.c.l.b16 %v783
    %v818 = vunpack.c.l.b16 %v784
    %v819 = vunpack.c.l.b16 %v785
    %v820 = vunpack.c.l.b16 %v786
    %v821 = vunpack.c.l.b16 %v787
    %v822 = vunpack.c.l.b16 %v788
    %v823 = vunpack.c.l.b16 %v789
    %v824 = vpack.c.b16 %v809, %v808
    %v825 = vpack.c.b16 %v811, %v810
    %v826 = vpack.c.b16 %v813, %v812
    %v827 = vpack.c.b16 %v815, %v814
    %v828 = vpack.c.b16 %v817, %v816
    %v829 = vpack.c.b16 %v819, %v818
    %v830 = vpack.c.b16 %v821, %v820
    %v831 = vpack.c.b16 %v823, %v822
    %840 = vmatpush.bf16.msra.mxu0 %v831
    %841 = vmatpush.bf16.msra.mxu0 %v830
    %842 = vmatpush.bf16.msra.mxu0 %v829
    %843 = vmatpush.bf16.msra.mxu0 %v828
    %844 = vmatpush.bf16.msra.mxu0 %v827
    %845 = vmatpush.bf16.msra.mxu0 %v826
    %846 = vmatpush.bf16.msra.mxu0 %v825
    %847 = vmatpush.bf16.msra.mxu0 %v824
    %848 = vmatmul.bf16.gmra.mxu0 %v773
    %v849 = vpop.f32.mrf.mxu0
    %v850 = vadd.f32 %v791, %v849
    %v851 = vpop.f32.mrf.mxu0
    %v852 = vadd.f32 %v791, %v851
    %853 = vdwg.mxu0
    %v854 = vadd.f32 %v665, %v850
    %v855 = vadd.f32 %v666, %v852
    %v856 = vld [vmem:[%s6 + $0x8] sm:$0x1]
    %v857 = vld [vmem:[%s6 + $0x9] sm:$0x1]
    %v858 = vsel %vm39, %v854, 0.0
    %859 = vadd.xlane.f32.xlu0 %v858
    %v860 = vpop.xlane.xlu0 %859
    %v861 = vsel %vm39, %v855, 0.0
    %862 = vadd.xlane.f32.xlu0 %v861
    %v863 = vpop.xlane.xlu0 %862
    %v864 = vmul.f32 %v860, %v52
    %v865 = vmul.f32 %v863, %v52
    %v866 = vsub.f32 %v854, %v864
    %v867 = vsub.f32 %v855, %v865
    %v868 = vmul.f32 %v866, %v866
    %v869 = vmul.f32 %v867, %v867
    %v870 = vsel %vm39, %v868, 0.0
    %871 = vadd.xlane.f32.xlu0 %v870
    %v872 = vpop.xlane.xlu0 %871
    %v873 = vsel %vm39, %v869, 0.0
    %874 = vadd.xlane.f32.xlu0 %v873
    %v875 = vpop.xlane.xlu0 %874
    %v876 = vmul.f32 %v872, %v52
    %v877 = vmul.f32 %v875, %v52
    %v878 = vadd.f32 %v876, 1e-05
    %v879 = vadd.f32 %v877, 1e-05
    %v880 = vrsqrt.pop %v878
    %v881 = vmul.f32 %v880, %v878
    %v882 = vmul.f32 %v881, %v880
    %v883 = vmul.f32 0.5, %v882
    %v884 = vsub.f32 1.5, %v883
    %v885 = vmul.f32 %v880, %v884
    %vm886 = vweird.f32 %v878
    %vm887 = vweird.f32 %v880
    %vm888 = vmor %vm886, %vm887
    %v889 = vsel %vm888, %v880, %v885
    %v890 = vrsqrt.pop %v879
    %v891 = vmul.f32 %v890, %v879
    %v892 = vmul.f32 %v891, %v890
    %v893 = vmul.f32 0.5, %v892
    %v894 = vsub.f32 1.5, %v893
    %v895 = vmul.f32 %v890, %v894
    %vm896 = vweird.f32 %v879
    %vm897 = vweird.f32 %v890
    %vm898 = vmor %vm896, %vm897
    %v899 = vsel %vm898, %v890, %v895
    %v900 = vmul.f32 %v866, %v889
    %v901 = vmul.f32 %v867, %v899
    %v902 = vperm.slane %v856, 0
    %v903 = vmul.f32 %v900, %v902
    %v904 = vmul.f32 %v901, %v902
    %v905 = vperm.slane %v857, 0
    %v906 = vadd.f32 %v903, %v905
    %v907 = vadd.f32 %v904, %v905
    %v908 = vpack.c.bf16 %v907, %v906
    %s909 = scalar_lea.vmem %s1, 16
    %v910 = vld [vmem:[%s909] sm:$0xf]
    %v911 = vld [vmem:[%s909 + $0x4] sm:$0xf]
    %v912 = vld [vmem:[%s909 + $0x8] sm:$0xf]
    %v913 = vld [vmem:[%s909 + $0xc] sm:$0xf]
    %v914 = vld [vmem:[%s6 + $0xa] sm:$0x1]
    %v915 = vperm.slane %v914, 0
    %v920 = vunpack.c.l.b16 %v910
    %v921 = vunpack.c.l.b16 %v911
    %v922 = vunpack.c.l.b16 %v912
    %v923 = vunpack.c.l.b16 %v913
    %v924 = vpack.c.b16 %v921, %v920
    %v925 = vpack.c.b16 %v923, %v922
    %v929 = vsel %vm39, %v908, 0
    %931 = vmatpush.bf16.msra.mxu0 0
    %932 = vmatpush.bf16.msra.mxu0 0
    %933 = vmatpush.bf16.msra.mxu0 0
    %934 = vmatpush.bf16.msra.mxu0 0
    %935 = vmatpush.bf16.msra.mxu0 0
    %936 = vmatpush.bf16.msra.mxu0 0
    %937 = vmatpush.bf16.msra.mxu0 %v925
    %938 = vmatpush.bf16.msra.mxu0 %v924
    %939 = vmatmul.bf16.gmra.mxu0 %v929
    %v940 = vpop.f32.mrf.mxu0
    %v941 = vadd.f32 %v915, %v940
    %v942 = vpop.f32.mrf.mxu0
    %v943 = vadd.f32 %v915, %v942
    %944 = vdwg.mxu0
    %v945 = vpack.c.bf16 %v941, %v941
    %v946 = vpack.c.bf16 %v943, %v943
    %v948 = vunpack.c.l.b16 %v945
    %v949 = vpack.c.b16 %v948, %v948
    %950 = vrot.lane.b32.xlu0 %v949, 96
    %v951 = vpop.permute.xlu0 %950
    %v953 = vsel %vm140, %v945, 0
    %v956 = vsel %vm140, %v951, 0
    %958 = vmatpush.bf16.xpose.msra.mxu0 0
    %959 = vmatpush.bf16.xpose.msra.mxu0 0
    %960 = vmatpush.bf16.xpose.msra.mxu0 0
    %961 = vmatpush.bf16.xpose.msra.mxu0 0
    %962 = vmatpush.bf16.xpose.msra.mxu0 0
    %963 = vmatpush.bf16.xpose.msra.mxu0 0
    %964 = vmatpush.bf16.xpose.msra.mxu0 0
    %965 = vmatpush.bf16.xpose.msra.mxu0 %v956
    %966 = vmatmul.bf16.gmra.mxu0 %v953
    %v967 = vpop.f32.mrf.mxu0
    %v968 = vadd.f32 0.0, %v967
    %v969 = vpop.f32.mrf.mxu0
    %970 = vdwg.mxu0
    %v972 = vunpack.c.l.b16 %v946
    %v973 = vpack.c.b16 %v972, %v972
    %974 = vrot.lane.b32.xlu0 %v973, 96
    %v975 = vpop.permute.xlu0 %974
    %v977 = vsel %vm140, %v946, 0
    %v980 = vsel %vm140, %v975, 0
    %982 = vmatpush.bf16.xpose.msra.mxu0 0
    %983 = vmatpush.bf16.xpose.msra.mxu0 0
    %984 = vmatpush.bf16.xpose.msra.mxu0 0
    %985 = vmatpush.bf16.xpose.msra.mxu0 0
    %986 = vmatpush.bf16.xpose.msra.mxu0 0
    %987 = vmatpush.bf16.xpose.msra.mxu0 0
    %988 = vmatpush.bf16.xpose.msra.mxu0 0
    %989 = vmatpush.bf16.xpose.msra.mxu0 %v980
    %990 = vmatmul.bf16.gmra.mxu0 %v977
    %v991 = vpop.f32.mrf.mxu0
    %v992 = vadd.f32 0.0, %v991
    %v993 = vpop.f32.mrf.mxu0
    %994 = vdwg.mxu0
    %v995 = vsel %vm36, %v968, -1e+30
    %v996 = vsel %vm36, %v992, -1e+30
    %v997 = vsel %vm140, %v995, -inf
    %998 = vmax.xlane.f32.xlu0 %v997
    %v999 = vpop.xlane.xlu0 %998
    %v1000 = vsel %vm140, %v996, -inf
    %1001 = vmax.xlane.f32.xlu0 %v1000
    %v1002 = vpop.xlane.xlu0 %1001
    %v1003 = vsub.f32 %v995, %v999
    %v1004 = vsub.f32 %v996, %v1002
    %v1005 = vmul.f32 %v1003, 1.442695
    %v1006 = vpow.pop %v1005
    %v1007 = vmul.f32 %v1004, 1.442695
    %v1008 = vpow.pop %v1007
    %v1009 = vsel %vm140, %v1006, 0.0
    %1010 = vadd.xlane.f32.xlu0 %v1009
    %v1011 = vpop.xlane.xlu0 %1010
    %v1012 = vsel %vm140, %v1008, 0.0
    %1013 = vadd.xlane.f32.xlu0 %v1012
    %v1014 = vpop.xlane.xlu0 %1013
    %v1015 = vrcp.pop %v1011
    %v1016 = vrcp.pop %v1014
    %v1017 = vmul.f32 %v1006, %v1015
    %v1018 = vmul.f32 %v1008, %v1016
    %v1019 = vpack.c.bf16 %v1017, %v1017
    %v1020 = vpack.c.bf16 %v1018, %v1018
    %1021 = vrot.lane.b32.xlu0 %v949, 64
    %v1022 = vpop.permute.xlu0 %1021
    %v1024 = vsel %vm140, %v1019, 0
    %v1027 = vsel %vm215, %v1022, 0
    %1029 = vmatpush.bf16.msra.mxu0 0
    %1030 = vmatpush.bf16.msra.mxu0 0
    %1031 = vmatpush.bf16.msra.mxu0 0
    %1032 = vmatpush.bf16.msra.mxu0 0
    %1033 = vmatpush.bf16.msra.mxu0 0
    %1034 = vmatpush.bf16.msra.mxu0 0
    %1035 = vmatpush.bf16.msra.mxu0 0
    %1036 = vmatpush.bf16.msra.mxu0 %v1027
    %1037 = vmatmul.bf16.gmra.mxu0 %v1024
    %v1038 = vpop.f32.mrf.mxu0
    %v1039 = vadd.f32 0.0, %v1038
    %v1040 = vpop.f32.mrf.mxu0
    %1041 = vdwg.mxu0
    %1042 = vrot.lane.b32.xlu0 %v973, 64
    %v1043 = vpop.permute.xlu0 %1042
    %v1045 = vsel %vm140, %v1020, 0
    %v1048 = vsel %vm215, %v1043, 0
    %1050 = vmatpush.bf16.msra.mxu0 0
    %1051 = vmatpush.bf16.msra.mxu0 0
    %1052 = vmatpush.bf16.msra.mxu0 0
    %1053 = vmatpush.bf16.msra.mxu0 0
    %1054 = vmatpush.bf16.msra.mxu0 0
    %1055 = vmatpush.bf16.msra.mxu0 0
    %1056 = vmatpush.bf16.msra.mxu0 0
    %1057 = vmatpush.bf16.msra.mxu0 %v1048
    %1058 = vmatmul.bf16.gmra.mxu0 %v1045
    %v1059 = vpop.f32.mrf.mxu0
    %v1060 = vadd.f32 0.0, %v1059
    %v1061 = vpop.f32.mrf.mxu0
    %1062 = vdwg.mxu0
    %1063 = vrot.lane.b32.xlu0 %v949, 120
    %v1064 = vpop.permute.xlu0 %1063
    %1065 = vrot.lane.b32.xlu0 %v949, 88
    %v1066 = vpop.permute.xlu0 %1065
    %v1068 = vsel %vm140, %v1064, 0
    %v1071 = vsel %vm140, %v1066, 0
    %1073 = vmatpush.bf16.xpose.msra.mxu0 0
    %1074 = vmatpush.bf16.xpose.msra.mxu0 0
    %1075 = vmatpush.bf16.xpose.msra.mxu0 0
    %1076 = vmatpush.bf16.xpose.msra.mxu0 0
    %1077 = vmatpush.bf16.xpose.msra.mxu0 0
    %1078 = vmatpush.bf16.xpose.msra.mxu0 0
    %1079 = vmatpush.bf16.xpose.msra.mxu0 0
    %1080 = vmatpush.bf16.xpose.msra.mxu0 %v1071
    %1081 = vmatmul.bf16.gmra.mxu0 %v1068
    %v1082 = vpop.f32.mrf.mxu0
    %v1083 = vadd.f32 0.0, %v1082
    %v1084 = vpop.f32.mrf.mxu0
    %1085 = vdwg.mxu0
    %1086 = vrot.lane.b32.xlu0 %v973, 120
    %v1087 = vpop.permute.xlu0 %1086
    %1088 = vrot.lane.b32.xlu0 %v973, 88
    %v1089 = vpop.permute.xlu0 %1088
    %v1091 = vsel %vm140, %v1087, 0
    %v1094 = vsel %vm140, %v1089, 0
    %1096 = vmatpush.bf16.xpose.msra.mxu0 0
    %1097 = vmatpush.bf16.xpose.msra.mxu0 0
    %1098 = vmatpush.bf16.xpose.msra.mxu0 0
    %1099 = vmatpush.bf16.xpose.msra.mxu0 0
    %1100 = vmatpush.bf16.xpose.msra.mxu0 0
    %1101 = vmatpush.bf16.xpose.msra.mxu0 0
    %1102 = vmatpush.bf16.xpose.msra.mxu0 0
    %1103 = vmatpush.bf16.xpose.msra.mxu0 %v1094
    %1104 = vmatmul.bf16.gmra.mxu0 %v1091
    %v1105 = vpop.f32.mrf.mxu0
    %v1106 = vadd.f32 0.0, %v1105
    %v1107 = vpop.f32.mrf.mxu0
    %1108 = vdwg.mxu0
    %v1109 = vsel %vm36, %v1083, -1e+30
    %v1110 = vsel %vm36, %v1106, -1e+30
    %v1111 = vsel %vm140, %v1109, -inf
    %1112 = vmax.xlane.f32.xlu0 %v1111
    %v1113 = vpop.xlane.xlu0 %1112
    %v1114 = vsel %vm140, %v1110, -inf
    %1115 = vmax.xlane.f32.xlu0 %v1114
    %v1116 = vpop.xlane.xlu0 %1115
    %v1117 = vsub.f32 %v1109, %v1113
    %v1118 = vsub.f32 %v1110, %v1116
    %v1119 = vmul.f32 %v1117, 1.442695
    %v1120 = vpow.pop %v1119
    %v1121 = vmul.f32 %v1118, 1.442695
    %v1122 = vpow.pop %v1121
    %v1123 = vsel %vm140, %v1120, 0.0
    %1124 = vadd.xlane.f32.xlu0 %v1123
    %v1125 = vpop.xlane.xlu0 %1124
    %v1126 = vsel %vm140, %v1122, 0.0
    %1127 = vadd.xlane.f32.xlu0 %v1126
    %v1128 = vpop.xlane.xlu0 %1127
    %v1129 = vrcp.pop %v1125
    %v1130 = vrcp.pop %v1128
    %v1131 = vmul.f32 %v1120, %v1129
    %v1132 = vmul.f32 %v1122, %v1130
    %v1133 = vpack.c.bf16 %v1131, %v1131
    %v1134 = vpack.c.bf16 %v1132, %v1132
    %1135 = vrot.lane.b32.xlu0 %v949, 56
    %v1136 = vpop.permute.xlu0 %1135
    %v1138 = vsel %vm140, %v1133, 0
    %v1141 = vsel %vm215, %v1136, 0
    %1143 = vmatpush.bf16.msra.mxu0 0
    %1144 = vmatpush.bf16.msra.mxu0 0
    %1145 = vmatpush.bf16.msra.mxu0 0
    %1146 = vmatpush.bf16.msra.mxu0 0
    %1147 = vmatpush.bf16.msra.mxu0 0
    %1148 = vmatpush.bf16.msra.mxu0 0
    %1149 = vmatpush.bf16.msra.mxu0 0
    %1150 = vmatpush.bf16.msra.mxu0 %v1141
    %1151 = vmatmul.bf16.gmra.mxu0 %v1138
    %v1152 = vpop.f32.mrf.mxu0
    %v1153 = vadd.f32 0.0, %v1152
    %v1154 = vpop.f32.mrf.mxu0
    %1155 = vdwg.mxu0
    %1156 = vrot.lane.b32.xlu0 %v973, 56
    %v1157 = vpop.permute.xlu0 %1156
    %v1159 = vsel %vm140, %v1134, 0
    %v1162 = vsel %vm215, %v1157, 0
    %1164 = vmatpush.bf16.msra.mxu0 0
    %1165 = vmatpush.bf16.msra.mxu0 0
    %1166 = vmatpush.bf16.msra.mxu0 0
    %1167 = vmatpush.bf16.msra.mxu0 0
    %1168 = vmatpush.bf16.msra.mxu0 0
    %1169 = vmatpush.bf16.msra.mxu0 0
    %1170 = vmatpush.bf16.msra.mxu0 0
    %1171 = vmatpush.bf16.msra.mxu0 %v1162
    %1172 = vmatmul.bf16.gmra.mxu0 %v1159
    %v1173 = vpop.f32.mrf.mxu0
    %v1174 = vadd.f32 0.0, %v1173
    %v1175 = vpop.f32.mrf.mxu0
    %1176 = vdwg.mxu0
    %1177 = vrot.lane.b32.xlu0 %v949, 112
    %v1178 = vpop.permute.xlu0 %1177
    %1179 = vrot.lane.b32.xlu0 %v949, 80
    %v1180 = vpop.permute.xlu0 %1179
    %v1182 = vsel %vm140, %v1178, 0
    %v1185 = vsel %vm140, %v1180, 0
    %1187 = vmatpush.bf16.xpose.msra.mxu0 0
    %1188 = vmatpush.bf16.xpose.msra.mxu0 0
    %1189 = vmatpush.bf16.xpose.msra.mxu0 0
    %1190 = vmatpush.bf16.xpose.msra.mxu0 0
    %1191 = vmatpush.bf16.xpose.msra.mxu0 0
    %1192 = vmatpush.bf16.xpose.msra.mxu0 0
    %1193 = vmatpush.bf16.xpose.msra.mxu0 0
    %1194 = vmatpush.bf16.xpose.msra.mxu0 %v1185
    %1195 = vmatmul.bf16.gmra.mxu0 %v1182
    %v1196 = vpop.f32.mrf.mxu0
    %v1197 = vadd.f32 0.0, %v1196
    %v1198 = vpop.f32.mrf.mxu0
    %1199 = vdwg.mxu0
    %1200 = vrot.lane.b32.xlu0 %v973, 112
    %v1201 = vpop.permute.xlu0 %1200
    %1202 = vrot.lane.b32.xlu0 %v973, 80
    %v1203 = vpop.permute.xlu0 %1202
    %v1205 = vsel %vm140, %v1201, 0
    %v1208 = vsel %vm140, %v1203, 0
    %1210 = vmatpush.bf16.xpose.msra.mxu0 0
    %1211 = vmatpush.bf16.xpose.msra.mxu0 0
    %1212 = vmatpush.bf16.xpose.msra.mxu0 0
    %1213 = vmatpush.bf16.xpose.msra.mxu0 0
    %1214 = vmatpush.bf16.xpose.msra.mxu0 0
    %1215 = vmatpush.bf16.xpose.msra.mxu0 0
    %1216 = vmatpush.bf16.xpose.msra.mxu0 0
    %1217 = vmatpush.bf16.xpose.msra.mxu0 %v1208
    %1218 = vmatmul.bf16.gmra.mxu0 %v1205
    %v1219 = vpop.f32.mrf.mxu0
    %v1220 = vadd.f32 0.0, %v1219
    %v1221 = vpop.f32.mrf.mxu0
    %1222 = vdwg.mxu0
    %v1223 = vsel %vm36, %v1197, -1e+30
    %v1224 = vsel %vm36, %v1220, -1e+30
    %v1225 = vsel %vm140, %v1223, -inf
    %1226 = vmax.xlane.f32.xlu0 %v1225
    %v1227 = vpop.xlane.xlu0 %1226
    %v1228 = vsel %vm140, %v1224, -inf
    %1229 = vmax.xlane.f32.xlu0 %v1228
    %v1230 = vpop.xlane.xlu0 %1229
    %v1231 = vsub.f32 %v1223, %v1227
    %v1232 = vsub.f32 %v1224, %v1230
    %v1233 = vmul.f32 %v1231, 1.442695
    %v1234 = vpow.pop %v1233
    %v1235 = vmul.f32 %v1232, 1.442695
    %v1236 = vpow.pop %v1235
    %v1237 = vsel %vm140, %v1234, 0.0
    %1238 = vadd.xlane.f32.xlu0 %v1237
    %v1239 = vpop.xlane.xlu0 %1238
    %v1240 = vsel %vm140, %v1236, 0.0
    %1241 = vadd.xlane.f32.xlu0 %v1240
    %v1242 = vpop.xlane.xlu0 %1241
    %v1243 = vrcp.pop %v1239
    %v1244 = vrcp.pop %v1242
    %v1245 = vmul.f32 %v1234, %v1243
    %v1246 = vmul.f32 %v1236, %v1244
    %v1247 = vpack.c.bf16 %v1245, %v1245
    %v1248 = vpack.c.bf16 %v1246, %v1246
    %1249 = vrot.lane.b32.xlu0 %v949, 48
    %v1250 = vpop.permute.xlu0 %1249
    %v1252 = vsel %vm140, %v1247, 0
    %v1255 = vsel %vm215, %v1250, 0
    %1257 = vmatpush.bf16.msra.mxu0 0
    %1258 = vmatpush.bf16.msra.mxu0 0
    %1259 = vmatpush.bf16.msra.mxu0 0
    %1260 = vmatpush.bf16.msra.mxu0 0
    %1261 = vmatpush.bf16.msra.mxu0 0
    %1262 = vmatpush.bf16.msra.mxu0 0
    %1263 = vmatpush.bf16.msra.mxu0 0
    %1264 = vmatpush.bf16.msra.mxu0 %v1255
    %1265 = vmatmul.bf16.gmra.mxu0 %v1252
    %v1266 = vpop.f32.mrf.mxu0
    %v1267 = vadd.f32 0.0, %v1266
    %v1268 = vpop.f32.mrf.mxu0
    %1269 = vdwg.mxu0
    %1270 = vrot.lane.b32.xlu0 %v973, 48
    %v1271 = vpop.permute.xlu0 %1270
    %v1273 = vsel %vm140, %v1248, 0
    %v1276 = vsel %vm215, %v1271, 0
    %1278 = vmatpush.bf16.msra.mxu0 0
    %1279 = vmatpush.bf16.msra.mxu0 0
    %1280 = vmatpush.bf16.msra.mxu0 0
    %1281 = vmatpush.bf16.msra.mxu0 0
    %1282 = vmatpush.bf16.msra.mxu0 0
    %1283 = vmatpush.bf16.msra.mxu0 0
    %1284 = vmatpush.bf16.msra.mxu0 0
    %1285 = vmatpush.bf16.msra.mxu0 %v1276
    %1286 = vmatmul.bf16.gmra.mxu0 %v1273
    %v1287 = vpop.f32.mrf.mxu0
    %v1288 = vadd.f32 0.0, %v1287
    %v1289 = vpop.f32.mrf.mxu0
    %1290 = vdwg.mxu0
    %1291 = vrot.lane.b32.xlu0 %v949, 104
    %v1292 = vpop.permute.xlu0 %1291
    %1293 = vrot.lane.b32.xlu0 %v949, 72
    %v1294 = vpop.permute.xlu0 %1293
    %v1296 = vsel %vm140, %v1292, 0
    %v1299 = vsel %vm140, %v1294, 0
    %1301 = vmatpush.bf16.xpose.msra.mxu0 0
    %1302 = vmatpush.bf16.xpose.msra.mxu0 0
    %1303 = vmatpush.bf16.xpose.msra.mxu0 0
    %1304 = vmatpush.bf16.xpose.msra.mxu0 0
    %1305 = vmatpush.bf16.xpose.msra.mxu0 0
    %1306 = vmatpush.bf16.xpose.msra.mxu0 0
    %1307 = vmatpush.bf16.xpose.msra.mxu0 0
    %1308 = vmatpush.bf16.xpose.msra.mxu0 %v1299
    %1309 = vmatmul.bf16.gmra.mxu0 %v1296
    %v1310 = vpop.f32.mrf.mxu0
    %v1311 = vadd.f32 0.0, %v1310
    %v1312 = vpop.f32.mrf.mxu0
    %1313 = vdwg.mxu0
    %1314 = vrot.lane.b32.xlu0 %v973, 104
    %v1315 = vpop.permute.xlu0 %1314
    %1316 = vrot.lane.b32.xlu0 %v973, 72
    %v1317 = vpop.permute.xlu0 %1316
    %v1319 = vsel %vm140, %v1315, 0
    %v1322 = vsel %vm140, %v1317, 0
    %1324 = vmatpush.bf16.xpose.msra.mxu0 0
    %1325 = vmatpush.bf16.xpose.msra.mxu0 0
    %1326 = vmatpush.bf16.xpose.msra.mxu0 0
    %1327 = vmatpush.bf16.xpose.msra.mxu0 0
    %1328 = vmatpush.bf16.xpose.msra.mxu0 0
    %1329 = vmatpush.bf16.xpose.msra.mxu0 0
    %1330 = vmatpush.bf16.xpose.msra.mxu0 0
    %1331 = vmatpush.bf16.xpose.msra.mxu0 %v1322
    %1332 = vmatmul.bf16.gmra.mxu0 %v1319
    %v1333 = vpop.f32.mrf.mxu0
    %v1334 = vadd.f32 0.0, %v1333
    %v1335 = vpop.f32.mrf.mxu0
    %1336 = vdwg.mxu0
    %v1337 = vsel %vm36, %v1311, -1e+30
    %v1338 = vsel %vm36, %v1334, -1e+30
    %v1339 = vsel %vm140, %v1337, -inf
    %1340 = vmax.xlane.f32.xlu0 %v1339
    %v1341 = vpop.xlane.xlu0 %1340
    %v1342 = vsel %vm140, %v1338, -inf
    %1343 = vmax.xlane.f32.xlu0 %v1342
    %v1344 = vpop.xlane.xlu0 %1343
    %v1345 = vsub.f32 %v1337, %v1341
    %v1346 = vsub.f32 %v1338, %v1344
    %v1347 = vmul.f32 %v1345, 1.442695
    %v1348 = vpow.pop %v1347
    %v1349 = vmul.f32 %v1346, 1.442695
    %v1350 = vpow.pop %v1349
    %v1351 = vsel %vm140, %v1348, 0.0
    %1352 = vadd.xlane.f32.xlu0 %v1351
    %v1353 = vpop.xlane.xlu0 %1352
    %v1354 = vsel %vm140, %v1350, 0.0
    %1355 = vadd.xlane.f32.xlu0 %v1354
    %v1356 = vpop.xlane.xlu0 %1355
    %v1357 = vrcp.pop %v1353
    %v1358 = vrcp.pop %v1356
    %v1359 = vmul.f32 %v1348, %v1357
    %v1360 = vmul.f32 %v1350, %v1358
    %v1361 = vpack.c.bf16 %v1359, %v1359
    %v1362 = vpack.c.bf16 %v1360, %v1360
    %1363 = vrot.lane.b32.xlu0 %v949, 40
    %v1364 = vpop.permute.xlu0 %1363
    %v1366 = vsel %vm140, %v1361, 0
    %v1369 = vsel %vm215, %v1364, 0
    %1371 = vmatpush.bf16.msra.mxu0 0
    %1372 = vmatpush.bf16.msra.mxu0 0
    %1373 = vmatpush.bf16.msra.mxu0 0
    %1374 = vmatpush.bf16.msra.mxu0 0
    %1375 = vmatpush.bf16.msra.mxu0 0
    %1376 = vmatpush.bf16.msra.mxu0 0
    %1377 = vmatpush.bf16.msra.mxu0 0
    %1378 = vmatpush.bf16.msra.mxu0 %v1369
    %1379 = vmatmul.bf16.gmra.mxu0 %v1366
    %v1380 = vpop.f32.mrf.mxu0
    %v1381 = vadd.f32 0.0, %v1380
    %v1382 = vpop.f32.mrf.mxu0
    %1383 = vdwg.mxu0
    %1384 = vrot.lane.b32.xlu0 %v973, 40
    %v1385 = vpop.permute.xlu0 %1384
    %v1387 = vsel %vm140, %v1362, 0
    %v1390 = vsel %vm215, %v1385, 0
    %1392 = vmatpush.bf16.msra.mxu0 0
    %1393 = vmatpush.bf16.msra.mxu0 0
    %1394 = vmatpush.bf16.msra.mxu0 0
    %1395 = vmatpush.bf16.msra.mxu0 0
    %1396 = vmatpush.bf16.msra.mxu0 0
    %1397 = vmatpush.bf16.msra.mxu0 0
    %1398 = vmatpush.bf16.msra.mxu0 0
    %1399 = vmatpush.bf16.msra.mxu0 %v1390
    %1400 = vmatmul.bf16.gmra.mxu0 %v1387
    %v1401 = vpop.f32.mrf.mxu0
    %v1402 = vadd.f32 0.0, %v1401
    %v1403 = vpop.f32.mrf.mxu0
    %1404 = vdwg.mxu0
    %1407 = vrot.lane.b32.xlu0 %v1153, 8
    %v1408 = vpop.permute.xlu0 %1407
    %1409 = vrot.lane.b32.xlu0 %v1174, 8
    %v1410 = vpop.permute.xlu0 %1409
    %1415 = vrot.lane.b32.xlu0 %v1267, 16
    %v1416 = vpop.permute.xlu0 %1415
    %1417 = vrot.lane.b32.xlu0 %v1288, 16
    %v1418 = vpop.permute.xlu0 %1417
    %1423 = vrot.lane.b32.xlu0 %v1381, 24
    %v1424 = vpop.permute.xlu0 %1423
    %1425 = vrot.lane.b32.xlu0 %v1402, 24
    %v1426 = vpop.permute.xlu0 %1425
    %v1429 = vsel %vm140, %v1039, %v1408
    %v1430 = vsel %vm140, %v1060, %v1410
    %v1431 = vsel %vm621, %v1429, %v1416
    %v1432 = vsel %vm621, %v1430, %v1418
    %v1433 = vsel %vm624, %v1431, %v1424
    %v1434 = vsel %vm624, %v1432, %v1426
    %v1435 = vpack.c.bf16 %v1434, %v1433
    %s1436 = scalar_lea.vmem %s2, 16
    %v1437 = vld [vmem:[%s1436] sm:$0xf]
    %v1438 = vld [vmem:[%s1436 + $0x4] sm:$0xf]
    %v1439 = vld [vmem:[%s1436 + $0x8] sm:$0xf]
    %v1440 = vld [vmem:[%s1436 + $0xc] sm:$0xf]
    %v1445 = vunpack.c.l.b16 %v1437
    %v1446 = vunpack.c.l.b16 %v1438
    %v1447 = vunpack.c.l.b16 %v1439
    %v1448 = vunpack.c.l.b16 %v1440
    %v1449 = vpack.c.b16 %v1446, %v1445
    %v1450 = vpack.c.b16 %v1448, %v1447
    %v1454 = vsel %vm39, %v1435, 0
    %1456 = vmatpush.bf16.msra.mxu0 0
    %1457 = vmatpush.bf16.msra.mxu0 0
    %1458 = vmatpush.bf16.msra.mxu0 0
    %1459 = vmatpush.bf16.msra.mxu0 0
    %1460 = vmatpush.bf16.msra.mxu0 0
    %1461 = vmatpush.bf16.msra.mxu0 0
    %1462 = vmatpush.bf16.msra.mxu0 %v1450
    %1463 = vmatpush.bf16.msra.mxu0 %v1449
    %1464 = vmatmul.bf16.gmra.mxu0 %v1454
    %v1465 = vpop.f32.mrf.mxu0
    %v1466 = vadd.f32 0.0, %v1465
    %v1467 = vpop.f32.mrf.mxu0
    %v1468 = vadd.f32 0.0, %v1467
    %1469 = vdwg.mxu0
    %v1470 = vadd.f32 %v854, %v1466
    %v1471 = vadd.f32 %v855, %v1468
    %v1472 = vld [vmem:[%s6 + $0xb] sm:$0x1]
    %v1473 = vperm.slane %v1472, 0
    %v1474 = vadd.f32 %v1470, %v1473
    %v1475 = vadd.f32 %v1471, %v1473
    %v1476 = vld [vmem:[%s6 + $0xc] sm:$0x1]
    %v1477 = vld [vmem:[%s6 + $0xd] sm:$0x1]
    %v1478 = vsel %vm39, %v1474, 0.0
    %1479 = vadd.xlane.f32.xlu0 %v1478
    %v1480 = vpop.xlane.xlu0 %1479
    %v1481 = vsel %vm39, %v1475, 0.0
    %1482 = vadd.xlane.f32.xlu0 %v1481
    %v1483 = vpop.xlane.xlu0 %1482
    %v1484 = vmul.f32 %v1480, %v52
    %v1485 = vmul.f32 %v1483, %v52
    %v1486 = vsub.f32 %v1474, %v1484
    %v1487 = vsub.f32 %v1475, %v1485
    %v1488 = vmul.f32 %v1486, %v1486
    %v1489 = vmul.f32 %v1487, %v1487
    %v1490 = vsel %vm39, %v1488, 0.0
    %1491 = vadd.xlane.f32.xlu0 %v1490
    %v1492 = vpop.xlane.xlu0 %1491
    %v1493 = vsel %vm39, %v1489, 0.0
    %1494 = vadd.xlane.f32.xlu0 %v1493
    %v1495 = vpop.xlane.xlu0 %1494
    %v1496 = vmul.f32 %v1492, %v52
    %v1497 = vmul.f32 %v1495, %v52
    %v1498 = vadd.f32 %v1496, 1e-05
    %v1499 = vadd.f32 %v1497, 1e-05
    %v1500 = vrsqrt.pop %v1498
    %v1501 = vmul.f32 %v1500, %v1498
    %v1502 = vmul.f32 %v1501, %v1500
    %v1503 = vmul.f32 0.5, %v1502
    %v1504 = vsub.f32 1.5, %v1503
    %v1505 = vmul.f32 %v1500, %v1504
    %vm1506 = vweird.f32 %v1498
    %vm1507 = vweird.f32 %v1500
    %vm1508 = vmor %vm1506, %vm1507
    %v1509 = vsel %vm1508, %v1500, %v1505
    %v1510 = vrsqrt.pop %v1499
    %v1511 = vmul.f32 %v1510, %v1499
    %v1512 = vmul.f32 %v1511, %v1510
    %v1513 = vmul.f32 0.5, %v1512
    %v1514 = vsub.f32 1.5, %v1513
    %v1515 = vmul.f32 %v1510, %v1514
    %vm1516 = vweird.f32 %v1499
    %vm1517 = vweird.f32 %v1510
    %vm1518 = vmor %vm1516, %vm1517
    %v1519 = vsel %vm1518, %v1510, %v1515
    %v1520 = vmul.f32 %v1486, %v1509
    %v1521 = vmul.f32 %v1487, %v1519
    %v1522 = vperm.slane %v1476, 0
    %v1523 = vmul.f32 %v1520, %v1522
    %v1524 = vmul.f32 %v1521, %v1522
    %v1525 = vperm.slane %v1477, 0
    %v1526 = vadd.f32 %v1523, %v1525
    %v1527 = vadd.f32 %v1524, %v1525
    %v1528 = vpack.c.bf16 %v1527, %v1526
    %s1529 = scalar_lea.vmem %s3, 16
    %v1530 = vld [vmem:[%s1529] sm:$0xf]
    %v1531 = vld [vmem:[%s1529 + $0x4] sm:$0xf]
    %v1532 = vld [vmem:[%s1529 + $0x8] sm:$0xf]
    %v1533 = vld [vmem:[%s1529 + $0xc] sm:$0xf]
    %v1534 = vld [vmem:[%s6 + $0xe] sm:$0x1]
    %v1535 = vperm.slane %v1534, 0
    %v1540 = vunpack.c.l.b16 %v1530
    %v1541 = vunpack.c.l.b16 %v1531
    %v1542 = vunpack.c.l.b16 %v1532
    %v1543 = vunpack.c.l.b16 %v1533
    %v1544 = vpack.c.b16 %v1541, %v1540
    %v1545 = vpack.c.b16 %v1543, %v1542
    %v1549 = vsel %vm39, %v1528, 0
    %1551 = vmatpush.bf16.msra.mxu0 0
    %1552 = vmatpush.bf16.msra.mxu0 0
    %1553 = vmatpush.bf16.msra.mxu0 0
    %1554 = vmatpush.bf16.msra.mxu0 0
    %1555 = vmatpush.bf16.msra.mxu0 0
    %1556 = vmatpush.bf16.msra.mxu0 0
    %1557 = vmatpush.bf16.msra.mxu0 %v1545
    %1558 = vmatpush.bf16.msra.mxu0 %v1544
    %1559 = vmatmul.bf16.gmra.mxu0 %v1549
    %v1560 = vpop.f32.mrf.mxu0
    %v1561 = vadd.f32 %v1535, %v1560
    %v1562 = vpop.f32.mrf.mxu0
    %v1563 = vadd.f32 %v1535, %v1562
    %1564 = vdwg.mxu0
    %v1565 = vmul.f32 %v1561, 0.5
    %v1566 = vmul.f32 %v1563, 0.5
    %v1567 = vmul.f32 %v1561, %v1561
    %v1568 = vmul.f32 %v1563, %v1563
    %v1569 = vmul.f32 %v1561, %v1567
    %v1570 = vmul.f32 %v1563, %v1568
    %v1571 = vmul.f32 %v1569, 0.044715
    %v1572 = vmul.f32 %v1570, 0.044715
    %v1573 = vadd.f32 %v1561, %v1571
    %v1574 = vadd.f32 %v1563, %v1572
    %v1575 = vmul.f32 %v1573, 0.7978846
    %v1576 = vmul.f32 %v1574, 0.7978846
    %v1577 = vtanh.pop %v1575
    %v1578 = vtanh.pop %v1576
    %v1579 = vadd.f32 %v1577, 1.0
    %v1580 = vadd.f32 %v1578, 1.0
    %v1581 = vmul.f32 %v1565, %v1579
    %v1582 = vmul.f32 %v1566, %v1580
    %v1583 = vpack.c.bf16 %v1582, %v1581
    %s1584 = scalar_lea.vmem %s4, 64
    %v1585 = vld [vmem:[%s1584] sm:$0xf]
    %v1586 = vld [vmem:[%s1584 + $0x4] sm:$0xf]
    %v1587 = vld [vmem:[%s1584 + $0x8] sm:$0xf]
    %v1588 = vld [vmem:[%s1584 + $0xc] sm:$0xf]
    %v1589 = vld [vmem:[%s1584 + $0x10] sm:$0xf]
    %v1590 = vld [vmem:[%s1584 + $0x14] sm:$0xf]
    %v1591 = vld [vmem:[%s1584 + $0x18] sm:$0xf]
    %v1592 = vld [vmem:[%s1584 + $0x1c] sm:$0xf]
    %v1593 = vld [vmem:[%s1584 + $0x20] sm:$0xf]
    %v1594 = vld [vmem:[%s1584 + $0x24] sm:$0xf]
    %v1595 = vld [vmem:[%s1584 + $0x28] sm:$0xf]
    %v1596 = vld [vmem:[%s1584 + $0x2c] sm:$0xf]
    %v1597 = vld [vmem:[%s1584 + $0x30] sm:$0xf]
    %v1598 = vld [vmem:[%s1584 + $0x34] sm:$0xf]
    %v1599 = vld [vmem:[%s1584 + $0x38] sm:$0xf]
    %v1600 = vld [vmem:[%s1584 + $0x3c] sm:$0xf]
    %v1601 = vld [vmem:[%s6 + $0xf] sm:$0x1]
    %v1602 = vperm.slane %v1601, 0
    %v1619 = vunpack.c.l.b16 %v1585
    %v1620 = vunpack.c.l.b16 %v1586
    %v1621 = vunpack.c.l.b16 %v1587
    %v1622 = vunpack.c.l.b16 %v1588
    %v1623 = vunpack.c.l.b16 %v1589
    %v1624 = vunpack.c.l.b16 %v1590
    %v1625 = vunpack.c.l.b16 %v1591
    %v1626 = vunpack.c.l.b16 %v1592
    %v1627 = vunpack.c.l.b16 %v1593
    %v1628 = vunpack.c.l.b16 %v1594
    %v1629 = vunpack.c.l.b16 %v1595
    %v1630 = vunpack.c.l.b16 %v1596
    %v1631 = vunpack.c.l.b16 %v1597
    %v1632 = vunpack.c.l.b16 %v1598
    %v1633 = vunpack.c.l.b16 %v1599
    %v1634 = vunpack.c.l.b16 %v1600
    %v1635 = vpack.c.b16 %v1620, %v1619
    %v1636 = vpack.c.b16 %v1622, %v1621
    %v1637 = vpack.c.b16 %v1624, %v1623
    %v1638 = vpack.c.b16 %v1626, %v1625
    %v1639 = vpack.c.b16 %v1628, %v1627
    %v1640 = vpack.c.b16 %v1630, %v1629
    %v1641 = vpack.c.b16 %v1632, %v1631
    %v1642 = vpack.c.b16 %v1634, %v1633
    %1651 = vmatpush.bf16.msra.mxu0 %v1642
    %1652 = vmatpush.bf16.msra.mxu0 %v1641
    %1653 = vmatpush.bf16.msra.mxu0 %v1640
    %1654 = vmatpush.bf16.msra.mxu0 %v1639
    %1655 = vmatpush.bf16.msra.mxu0 %v1638
    %1656 = vmatpush.bf16.msra.mxu0 %v1637
    %1657 = vmatpush.bf16.msra.mxu0 %v1636
    %1658 = vmatpush.bf16.msra.mxu0 %v1635
    %1659 = vmatmul.bf16.gmra.mxu0 %v1583
    %v1660 = vpop.f32.mrf.mxu0
    %v1661 = vadd.f32 %v1602, %v1660
    %v1662 = vpop.f32.mrf.mxu0
    %v1663 = vadd.f32 %v1602, %v1662
    %1664 = vdwg.mxu0
    %v1665 = vadd.f32 %v1474, %v1661
    %v1666 = vadd.f32 %v1475, %v1663
    %v1667 = vld [vmem:[%s6 + $0x10] sm:$0x1]
    %v1668 = vld [vmem:[%s6 + $0x11] sm:$0x1]
    %v1669 = vsel %vm39, %v1665, 0.0
    %1670 = vadd.xlane.f32.xlu0 %v1669
    %v1671 = vpop.xlane.xlu0 %1670
    %v1672 = vsel %vm39, %v1666, 0.0
    %1673 = vadd.xlane.f32.xlu0 %v1672
    %v1674 = vpop.xlane.xlu0 %1673
    %v1675 = vmul.f32 %v1671, %v52
    %v1676 = vmul.f32 %v1674, %v52
    %v1677 = vsub.f32 %v1665, %v1675
    %v1678 = vsub.f32 %v1666, %v1676
    %v1679 = vmul.f32 %v1677, %v1677
    %v1680 = vmul.f32 %v1678, %v1678
    %v1681 = vsel %vm39, %v1679, 0.0
    %1682 = vadd.xlane.f32.xlu0 %v1681
    %v1683 = vpop.xlane.xlu0 %1682
    %v1684 = vsel %vm39, %v1680, 0.0
    %1685 = vadd.xlane.f32.xlu0 %v1684
    %v1686 = vpop.xlane.xlu0 %1685
    %v1687 = vmul.f32 %v1683, %v52
    %v1688 = vmul.f32 %v1686, %v52
    %v1689 = vadd.f32 %v1687, 1e-05
    %v1690 = vadd.f32 %v1688, 1e-05
    %v1691 = vrsqrt.pop %v1689
    %v1692 = vmul.f32 %v1691, %v1689
    %v1693 = vmul.f32 %v1692, %v1691
    %v1694 = vmul.f32 0.5, %v1693
    %v1695 = vsub.f32 1.5, %v1694
    %v1696 = vmul.f32 %v1691, %v1695
    %vm1697 = vweird.f32 %v1689
    %vm1698 = vweird.f32 %v1691
    %vm1699 = vmor %vm1697, %vm1698
    %v1700 = vsel %vm1699, %v1691, %v1696
    %v1701 = vrsqrt.pop %v1690
    %v1702 = vmul.f32 %v1701, %v1690
    %v1703 = vmul.f32 %v1702, %v1701
    %v1704 = vmul.f32 0.5, %v1703
    %v1705 = vsub.f32 1.5, %v1704
    %v1706 = vmul.f32 %v1701, %v1705
    %vm1707 = vweird.f32 %v1690
    %vm1708 = vweird.f32 %v1701
    %vm1709 = vmor %vm1707, %vm1708
    %v1710 = vsel %vm1709, %v1701, %v1706
    %v1711 = vmul.f32 %v1677, %v1700
    %v1712 = vmul.f32 %v1678, %v1710
    %v1713 = vperm.slane %v1667, 0
    %v1714 = vmul.f32 %v1711, %v1713
    %v1715 = vmul.f32 %v1712, %v1713
    %v1716 = vperm.slane %v1668, 0
    %v1717 = vadd.f32 %v1714, %v1716
    %v1718 = vadd.f32 %v1715, %v1716
    %v1719 = vpack.c.bf16 %v1718, %v1717
    %v1720 = vld [vmem:[%s5] sm:$0xf]
    %v1721 = vld [vmem:[%s5 + $0x4] sm:$0xf]
    %v1722 = vld [vmem:[%s5 + $0x8] sm:$0xf]
    %v1723 = vld [vmem:[%s5 + $0xc] sm:$0xf]
    %v1728 = vunpack.c.l.b16 %v1720
    %v1729 = vunpack.c.l.b16 %v1721
    %v1730 = vunpack.c.l.b16 %v1722
    %v1731 = vunpack.c.l.b16 %v1723
    %v1732 = vpack.c.b16 %v1729, %v1728
    %v1733 = vpack.c.b16 %v1731, %v1730
    %v1737 = vsel %vm39, %v1719, 0
    %1739 = vmatpush.bf16.msra.mxu0 0
    %1740 = vmatpush.bf16.msra.mxu0 0
    %1741 = vmatpush.bf16.msra.mxu0 0
    %1742 = vmatpush.bf16.msra.mxu0 0
    %1743 = vmatpush.bf16.msra.mxu0 0
    %1744 = vmatpush.bf16.msra.mxu0 0
    %1745 = vmatpush.bf16.msra.mxu0 %v1733
    %1746 = vmatpush.bf16.msra.mxu0 %v1732
    %1747 = vmatmul.bf16.gmra.mxu0 %v1737
    %v1748 = vpop.f32.mrf.mxu0
    %v1749 = vadd.f32 0.0, %v1748
    %v1750 = vpop.f32.mrf.mxu0
    %v1751 = vadd.f32 0.0, %v1750
    %1752 = vdwg.mxu0
    %1753 = vst [vmem:[#allocation2] sm:$0xff] %v1749
    %1754 = vst [vmem:[#allocation2 + $0x8] sm:$0xff] %v1751
    // Predicated region
    $region30: #{gpt2_forward.1} parent=1 // pred_check
      _
    $region31: #{gpt2_forward.1} parent=1 // pred_check_branch
      %1756 = sbr.rel (0) target = $region33
    $region32: #{gpt2_forward.1} parent=1 // pred_region
      %1758 = vsyncadd [#allocation3], 0
      %s1759 = sshll.u32 [#allocation2], 4
      %s1760 = int_to_ptr.vmem [resolvable:$true] %s1759
      %s1761 = sshll.u32 %s7, 4
      %s1762 = int_to_ptr.hbm [resolvable:$true] %s1761
      %1767 = dma.vmem_to_hbm [thread:$0]  %s1760, 256, %s1762, [#allocation3], 128, 128, 8
    $region33: #{gpt2_forward.1} parent=1 // pred_fallthru
      _
    // Predicated region
    $region34: #{gpt2_forward.1} parent=1 // pred_check
      _
    $region35: #{gpt2_forward.1} parent=1 // pred_check_branch
      %1769 = sbr.rel (0) target = $region37
    $region36: #{gpt2_forward.1} parent=1 // pred_region
      %1771 = dma.done [#allocation3], 256
    $region37: #{gpt2_forward.1} parent=1 // pred_fallthru
      _
    %1772 = vsyncpa [#allocation3], 1

</llo_original>
